<compile_context>
chip_gen: v5e
topology: v5e:2x2
jax: 0.10.0
libtpu: 0.0.40
codegen_flags: <defaults>
</compile_context>

<pallas_src>
import numpy as np
import jax
import jax.numpy as jnp
from jax import lax
from jax.experimental import pallas as pl
from jax.experimental.pallas import tpu as pltpu

EMBED = 32      # embedding_dim (== hidden_dim, required by the module's slicing)
HIDDEN = 32     # hidden_dim
VOCAB = 50      # vocab_size
LAYERS = 2      # gru_layers
BATCH = 2
SEQLEN = 8
NOUT = SEQLEN - 2   # timesteps surviving the [:-2] trim
GP = 128            # packed gate width: r|z|n at lanes 0:32 | 32:64 | 64:96, zero pad above

_VMEM = pl.BlockSpec(memory_space=pltpu.MemorySpace.VMEM)


# ----------------------------- fused Pallas kernel -------------------------- #

def _gru_steps(gi, whh, bhh, *, reverse, steps):
    """One GRU direction, fully unrolled at trace time.

    gi   : (rows, GP) precomputed x @ Wih + bih, time-major rows (row = t*B+b);
           gates packed r|z|n at lanes 0:3H, zeros above.
    whh  : (HIDDEN, GP) hidden->gate weights, packed the same way.
    bhh  : (1, GP)
    Returns a Python list of per-timestep hidden states, each (BATCH, HIDDEN),
    in forward-time order.
    """
    H = HIDDEN
    bhh_b = jnp.broadcast_to(bhh, (BATCH, GP))    # hoist broadcast out of the loop
    h = jnp.zeros((BATCH, H), jnp.float32)
    outs = []
    for i in range(steps):
        t = SEQLEN - 1 - i if reverse else i      # in-kernel time reversal
        gh = jnp.dot(h, whh, preferred_element_type=jnp.float32) + bhh_b   # (B, GP)
        g = gi[t * BATCH:(t + 1) * BATCH]                                   # (B, GP)
        rz = jax.nn.sigmoid(g[:, :2 * H] + gh[:, :2 * H])                   # (B, 2H)
        r = rz[:, :H]
        z = rz[:, H:]
        n = jnp.tanh(g[:, 2 * H:3 * H] + r * gh[:, 2 * H:3 * H])
        h = (1.0 - z) * n + z * h
        outs.append(h)
    return list(reversed(outs)) if reverse else outs


def _rnn_lm_kernel(x_ref,
                   wih0f_ref, bih0f_ref, whh0f_ref, bhh0f_ref,
                   wih0b_ref, bih0b_ref, whh0b_ref, bhh0b_ref,
                   wih1ff_ref, wih1fb_ref, bih1f_ref, whh1f_ref, bhh1f_ref,
                   wh_ref, bh_ref,
                   out_ref):
    x = x_ref[...]                                                    # (L*B, E)

    # ---- GRU layer 0: input-side matmuls hoisted off the recurrence path ---
    # Forward direction only needs the first NOUT timesteps (6,7 are dead).
    gi0f = jnp.dot(x[:NOUT * BATCH], wih0f_ref[...],
                   preferred_element_type=jnp.float32) + bih0f_ref[...]
    gi0b = jnp.dot(x, wih0b_ref[...],
                   preferred_element_type=jnp.float32) + bih0b_ref[...]

    # Layer-0 forward chain (6 live steps). Its contribution to the layer-1
    # input matmul is computed immediately so it overlaps the backward chain.
    h0f = _gru_steps(gi0f, whh0f_ref[...], bhh0f_ref[...],
                     reverse=False, steps=NOUT)
    h0f_all = jnp.concatenate(h0f, axis=0)                            # (12, H)
    gi1_from_f = jnp.dot(h0f_all, wih1ff_ref[...],
                         preferred_element_type=jnp.float32)

    # Layer-0 backward chain (all 8 steps; only t=0..5 outputs are consumed).
    h0b = _gru_steps(gi0b, whh0b_ref[...], bhh0b_ref[...],
                     reverse=True, steps=SEQLEN)
    h0b_all = jnp.concatenate(h0b[:NOUT], axis=0)                     # (12, H)

    gi1f = (gi1_from_f
            + jnp.dot(h0b_all, wih1fb_ref[...],
                      preferred_element_type=jnp.float32)
            + bih1f_ref[...])

    # ---- GRU layer 1, forward direction only, first NOUT steps only --------
    # The head consumes only the forward half of the last layer trimmed of its
    # final 2 steps (backward slice is discarded by the zip(forward, forward)
    # bug), so the layer-1 backward direction is dead code and skipped.
    h1f = _gru_steps(gi1f, whh1f_ref[...], bhh1f_ref[...],
                     reverse=False, steps=NOUT)
    feats = jnp.concatenate(h1f, axis=0)                              # (12, H)

    # ---- head: fc1 ∘ fc pre-folded into one GEMM -> log_softmax ------------
    # Padded logit lanes carry a -1e30 bias so they vanish from log_softmax;
    # the wrapper slices [:, :VOCAB] (documented invariant).
    logits = jnp.dot(feats, wh_ref[...],
                     preferred_element_type=jnp.float32) + bh_ref[...]
    m = jnp.max(logits, axis=1, keepdims=True)
    lse = jnp.log(jnp.sum(jnp.exp(logits - m), axis=1, keepdims=True)) + m
    out_ref[...] = logits - lse                      # (12, 128) lane-dense store


# ---------------- one-time weight packing / folding (outside jit) ----------- #

def _pack_gates(w):
    """(rows, 3*HIDDEN) -> (rows, GP): r|z|n at lanes 0:3H, zero above."""
    out = jnp.zeros((w.shape[0], GP), jnp.float32)
    return out.at[:, :3 * HIDDEN].set(w.astype(jnp.float32))


def prepare_weights(params):
    """Pack / fold all weights into the kernel layout ONCE (not per forward)."""
    p0, p1 = params['gru'][0], params['gru'][1]
    hi = lax.Precision.HIGHEST

    # fc1 ∘ fc folded into one GEMM (no nonlinearity between them); the
    # reference's zip(forward, forward) self-concat folds into w1[:H]+w1[H:].
    w1_fold = params['w1'][:HIDDEN] + params['w1'][HIDDEN:]              # (H, H)
    w_head = jnp.dot(w1_fold, params['w2'], precision=hi)                # (H, V)
    b_head = jnp.dot(params['b1'], params['w2'], precision=hi) + params['b2']
    w_head_p = jnp.zeros((HIDDEN, GP), jnp.float32).at[:, :VOCAB].set(w_head)
    b_head_p = jnp.full((1, GP), -1e30, jnp.float32).at[:, :VOCAB].set(b_head)

    prepped = dict(
        embedding=params['embedding'].astype(jnp.float32),
        wih0f=_pack_gates(p0['wih_f']), bih0f=_pack_gates(p0['bih_f']),
        whh0f=_pack_gates(p0['whh_f']), bhh0f=_pack_gates(p0['bhh_f']),
        wih0b=_pack_gates(p0['wih_b']), bih0b=_pack_gates(p0['bih_b']),
        whh0b=_pack_gates(p0['whh_b']), bhh0b=_pack_gates(p0['bhh_b']),
        # layer-1 Wih split into forward-half / backward-half contributions so
        # only the backward-half GEMM sits after the layer-0 backward chain.
        wih1ff=_pack_gates(p1['wih_f'][:HIDDEN]),
        wih1fb=_pack_gates(p1['wih_f'][HIDDEN:]),
        bih1f=_pack_gates(p1['bih_f']),
        whh1f=_pack_gates(p1['whh_f']), bhh1f=_pack_gates(p1['bhh_f']),
        w_head=w_head_p, b_head=b_head_p,
    )
    return jax.tree_util.tree_map(jax.device_put, prepped)


# ------------------------------ JAX wrapper --------------------------------- #

def rnn_lm_forward(prepped, packed_tokens):
    """packed_tokens: (SEQLEN*BATCH,) int32, time-major packed (equal lengths)."""
    # Embedding lookup (integer gather) is XLA-side glue; everything else runs
    # inside the single fused Pallas call.
    x = prepped['embedding'][packed_tokens]                            # (L*B, E)
    args = (
        x,
        prepped['wih0f'], prepped['bih0f'], prepped['whh0f'], prepped['bhh0f'],
        prepped['wih0b'], prepped['bih0b'], prepped['whh0b'], prepped['bhh0b'],
        prepped['wih1ff'], prepped['wih1fb'], prepped['bih1f'],
        prepped['whh1f'], prepped['bhh1f'],
        prepped['w_head'], prepped['b_head'],
    )
    n_rows = NOUT * BATCH
    out = pl.pallas_call(
        _rnn_lm_kernel,
        out_shape=jax.ShapeDtypeStruct((n_rows, GP), jnp.float32),
        in_specs=[_VMEM] * len(args),
        out_specs=_VMEM,
        cost_estimate=pl.CostEstimate(flops=1_000_000, transcendentals=8_000,
                                      bytes_accessed=260_000),
    )(*args)
    return out[:, :VOCAB]


# --------------------------- parameter init (synthetic) --------------------- #

def init_params(seed=0):
    key = jax.random.PRNGKey(seed)
    keys = iter(jax.random.split(key, 64))
    s = 1.0 / np.sqrt(HIDDEN)

    def u(shape, scale=s):
        return jax.random.uniform(next(keys), shape, jnp.float32, -scale, scale)

    params = {}
    params['embedding'] = 0.1 * jax.random.normal(next(keys), (VOCAB, EMBED),
                                                  jnp.float32)
    gru = []
    for layer in range(LAYERS):
        e_in = EMBED if layer == 0 else 2 * HIDDEN
        lp = {}
        for d in ('f', 'b'):
            lp['wih_' + d] = u((e_in, 3 * HIDDEN))   # stored transposed: (in, 3H)
            lp['whh_' + d] = u((HIDDEN, 3 * HIDDEN))
            lp['bih_' + d] = u((1, 3 * HIDDEN))
            lp['bhh_' + d] = u((1, 3 * HIDDEN))
        gru.append(lp)
    params['gru'] = gru
    params['w1'] = u((2 * HIDDEN, HIDDEN), 1.0 / np.sqrt(2 * HIDDEN))
    params['b1'] = u((1, HIDDEN), 1.0 / np.sqrt(2 * HIDDEN))
    params['w2'] = u((HIDDEN, VOCAB), 1.0 / np.sqrt(HIDDEN))
    params['b2'] = u((1, VOCAB), 1.0 / np.sqrt(HIDDEN))
    return params


# ------------------------------ pure-JAX reference -------------------------- #

def _gru_dir_ref(x, wih, whh, bih, bhh):
    H = HIDDEN

    def step(h, x_t):
        gi = jnp.dot(x_t, wih, precision=lax.Precision.HIGHEST) + bih
        gh = jnp.dot(h, whh, precision=lax.Precision.HIGHEST) + bhh
        r = jax.nn.sigmoid(gi[:, :H] + gh[:, :H])
        z = jax.nn.sigmoid(gi[:, H:2 * H] + gh[:, H:2 * H])
        n = jnp.tanh(gi[:, 2 * H:] + r * gh[:, 2 * H:])
        h_new = (1.0 - z) * n + z * h
        return h_new, h_new

    _, ys = lax.scan(step, jnp.zeros((x.shape[1], H), jnp.float32), x)
    return ys


def forward_ref(params, packed_tokens, batch=BATCH, seqlen=SEQLEN):
    emb = params['embedding'][packed_tokens]
    x = emb.reshape(seqlen, batch, EMBED)
    layer_in = x
    for layer in range(LAYERS):
        p = params['gru'][layer]
        out_f = _gru_dir_ref(layer_in, p['wih_f'], p['whh_f'],
                             p['bih_f'], p['bhh_f'])
        out_b = _gru_dir_ref(layer_in[::-1], p['wih_b'], p['whh_b'],
                             p['bih_b'], p['bhh_b'])[::-1]
        layer_in = jnp.concatenate([out_f, out_b], axis=-1)
    fwd_trim = layer_in[:seqlen - 2, :, :HIDDEN]
    feats = jnp.concatenate([fwd_trim, fwd_trim], axis=-1)
    feats = feats.reshape((seqlen - 2) * batch, 2 * HIDDEN)
    h1 = jnp.dot(feats, params['w1'], precision=lax.Precision.HIGHEST) + params['b1']
    logits = jnp.dot(h1, params['w2'], precision=lax.Precision.HIGHEST) + params['b2']
    return jax.nn.log_softmax(logits, axis=1)


# ----------------------------------- main ----------------------------------- #

if __name__ == "__main__":
    params = init_params(0)
    tok_key = jax.random.PRNGKey(0)
    # packed token stream: time-major, equal-length sentences of length SEQLEN
    packed_tokens = jax.random.randint(tok_key, (SEQLEN * BATCH,), 0, VOCAB,
                                       dtype=jnp.int32)

    # One-time weight packing / fc-folding, hoisted out of the per-call path.
    prepped = prepare_weights(params)

    fwd = jax.jit(rnn_lm_forward)
    out = jax.block_until_ready(fwd(prepped, packed_tokens))

    ref = forward_ref(params, packed_tokens)
    assert out.shape == (NOUT * BATCH, VOCAB), out.shape
    assert bool(jnp.all(jnp.isfinite(out)))
    np.testing.assert_allclose(np.asarray(out), np.asarray(ref),
                               atol=5e-3, rtol=5e-3)
    print("KERNEL_OK")
</pallas_src>

<mosaic_0001>
module attributes {stable_mosaic.version = 11 : i64} {
  func.func @_rnn_lm_kernel(%arg0: memref<16x32xf32, #tpu.memory_space<vmem>>, %arg1: memref<32x128xf32, #tpu.memory_space<vmem>>, %arg2: memref<1x128xf32, #tpu.memory_space<vmem>>, %arg3: memref<32x128xf32, #tpu.memory_space<vmem>>, %arg4: memref<1x128xf32, #tpu.memory_space<vmem>>, %arg5: memref<32x128xf32, #tpu.memory_space<vmem>>, %arg6: memref<1x128xf32, #tpu.memory_space<vmem>>, %arg7: memref<32x128xf32, #tpu.memory_space<vmem>>, %arg8: memref<1x128xf32, #tpu.memory_space<vmem>>, %arg9: memref<32x128xf32, #tpu.memory_space<vmem>>, %arg10: memref<32x128xf32, #tpu.memory_space<vmem>>, %arg11: memref<1x128xf32, #tpu.memory_space<vmem>>, %arg12: memref<32x128xf32, #tpu.memory_space<vmem>>, %arg13: memref<1x128xf32, #tpu.memory_space<vmem>>, %arg14: memref<32x128xf32, #tpu.memory_space<vmem>>, %arg15: memref<1x128xf32, #tpu.memory_space<vmem>>, %arg16: memref<12x128xf32, #tpu.memory_space<vmem>>) attributes {dimension_semantics = [], scalar_prefetch = 0 : i64, scratch_operands = 0 : i64, tpu.core_type = #tpu.core_type<tc>} {
    %c0 = arith.constant 0 : index
    %c0_0 = arith.constant 0 : index
    %0 = vector.load %arg0[%c0, %c0_0] : memref<16x32xf32, #tpu.memory_space<vmem>>, vector<16x32xf32>
    %1 = vector.extract_strided_slice %0 {offsets = [0, 0], sizes = [12, 32], strides = [1, 1]} : vector<16x32xf32> to vector<12x32xf32>
    %c0_1 = arith.constant 0 : index
    %c0_2 = arith.constant 0 : index
    %2 = vector.load %arg1[%c0_1, %c0_2] : memref<32x128xf32, #tpu.memory_space<vmem>>, vector<32x128xf32>
    %cst = arith.constant dense<0.000000e+00> : vector<12x128xf32>
    %3 = tpu.matmul %1, %2, %cst {dimension_numbers = #tpu.dot_dimension_numbers<[1], [0], [0], [1], [0, 0, 1, 1], [], []>} : vector<12x32xf32>, vector<32x128xf32>, vector<12x128xf32> -> vector<12x128xf32>
    %c0_3 = arith.constant 0 : index
    %c0_4 = arith.constant 0 : index
    %4 = vector.load %arg2[%c0_3, %c0_4] : memref<1x128xf32, #tpu.memory_space<vmem>>, vector<1x128xf32>
    %5 = vector.broadcast %4 : vector<1x128xf32> to vector<12x128xf32>
    %6 = arith.addf %3, %5 : vector<12x128xf32>
    %c0_5 = arith.constant 0 : index
    %c0_6 = arith.constant 0 : index
    %7 = vector.load %arg5[%c0_5, %c0_6] : memref<32x128xf32, #tpu.memory_space<vmem>>, vector<32x128xf32>
    %cst_7 = arith.constant dense<0.000000e+00> : vector<16x128xf32>
    %8 = tpu.matmul %0, %7, %cst_7 {dimension_numbers = #tpu.dot_dimension_numbers<[1], [0], [0], [1], [0, 0, 1, 1], [], []>} : vector<16x32xf32>, vector<32x128xf32>, vector<16x128xf32> -> vector<16x128xf32>
    %c0_8 = arith.constant 0 : index
    %c0_9 = arith.constant 0 : index
    %9 = vector.load %arg6[%c0_8, %c0_9] : memref<1x128xf32, #tpu.memory_space<vmem>>, vector<1x128xf32>
    %10 = vector.broadcast %9 : vector<1x128xf32> to vector<16x128xf32>
    %11 = arith.addf %8, %10 : vector<16x128xf32>
    %c0_10 = arith.constant 0 : index
    %c0_11 = arith.constant 0 : index
    %12 = vector.load %arg3[%c0_10, %c0_11] : memref<32x128xf32, #tpu.memory_space<vmem>>, vector<32x128xf32>
    %c0_12 = arith.constant 0 : index
    %c0_13 = arith.constant 0 : index
    %13 = vector.load %arg4[%c0_12, %c0_13] : memref<1x128xf32, #tpu.memory_space<vmem>>, vector<1x128xf32>
    %14 = vector.shape_cast %13 : vector<1x128xf32> to vector<1x128xf32>
    %15 = vector.broadcast %14 : vector<1x128xf32> to vector<2x128xf32>
    %cst_14 = arith.constant 0.000000e+00 : f32
    %16 = vector.broadcast %cst_14 : f32 to vector<2x32xf32>
    %cst_15 = arith.constant dense<0.000000e+00> : vector<2x128xf32>
    %17 = tpu.matmul %16, %12, %cst_15 {dimension_numbers = #tpu.dot_dimension_numbers<[1], [0], [0], [1], [0, 0, 1, 1], [], []>} : vector<2x32xf32>, vector<32x128xf32>, vector<2x128xf32> -> vector<2x128xf32>
    %18 = arith.addf %17, %15 : vector<2x128xf32>
    %19 = vector.extract_strided_slice %6 {offsets = [0, 0], sizes = [2, 128], strides = [1, 1]} : vector<12x128xf32> to vector<2x128xf32>
    %20 = vector.extract_strided_slice %19 {offsets = [0, 0], sizes = [2, 64], strides = [1, 1]} : vector<2x128xf32> to vector<2x64xf32>
    %21 = vector.extract_strided_slice %18 {offsets = [0, 0], sizes = [2, 64], strides = [1, 1]} : vector<2x128xf32> to vector<2x64xf32>
    %22 = arith.addf %20, %21 : vector<2x64xf32>
    %23 = arith.negf %22 : vector<2x64xf32>
    %24 = math.exp %23 : vector<2x64xf32>
    %cst_16 = arith.constant 1.000000e+00 : f32
    %25 = vector.broadcast %cst_16 : f32 to vector<2x64xf32>
    %26 = arith.addf %25, %24 : vector<2x64xf32>
    %27 = arith.divf %25, %26 : vector<2x64xf32>
    %28 = vector.extract_strided_slice %27 {offsets = [0, 0], sizes = [2, 32], strides = [1, 1]} : vector<2x64xf32> to vector<2x32xf32>
    %29 = vector.extract_strided_slice %27 {offsets = [0, 32], sizes = [2, 32], strides = [1, 1]} : vector<2x64xf32> to vector<2x32xf32>
    %30 = vector.extract_strided_slice %19 {offsets = [0, 64], sizes = [2, 32], strides = [1, 1]} : vector<2x128xf32> to vector<2x32xf32>
    %31 = vector.extract_strided_slice %18 {offsets = [0, 64], sizes = [2, 32], strides = [1, 1]} : vector<2x128xf32> to vector<2x32xf32>
    %32 = arith.mulf %28, %31 : vector<2x32xf32>
    %33 = arith.addf %30, %32 : vector<2x32xf32>
    %34 = math.tanh %33 : vector<2x32xf32>
    %cst_17 = arith.constant 1.000000e+00 : f32
    %35 = vector.broadcast %cst_17 : f32 to vector<2x32xf32>
    %36 = arith.subf %35, %29 : vector<2x32xf32>
    %37 = arith.mulf %36, %34 : vector<2x32xf32>
    %38 = arith.mulf %29, %16 : vector<2x32xf32>
    %39 = arith.addf %37, %38 : vector<2x32xf32>
    %cst_18 = arith.constant dense<0.000000e+00> : vector<2x128xf32>
    %40 = tpu.matmul %39, %12, %cst_18 {dimension_numbers = #tpu.dot_dimension_numbers<[1], [0], [0], [1], [0, 0, 1, 1], [], []>} : vector<2x32xf32>, vector<32x128xf32>, vector<2x128xf32> -> vector<2x128xf32>
    %41 = arith.addf %40, %15 : vector<2x128xf32>
    %42 = vector.extract_strided_slice %6 {offsets = [2, 0], sizes = [2, 128], strides = [1, 1]} : vector<12x128xf32> to vector<2x128xf32>
    %43 = vector.extract_strided_slice %42 {offsets = [0, 0], sizes = [2, 64], strides = [1, 1]} : vector<2x128xf32> to vector<2x64xf32>
    %44 = vector.extract_strided_slice %41 {offsets = [0, 0], sizes = [2, 64], strides = [1, 1]} : vector<2x128xf32> to vector<2x64xf32>
    %45 = arith.addf %43, %44 : vector<2x64xf32>
    %46 = arith.negf %45 : vector<2x64xf32>
    %47 = math.exp %46 : vector<2x64xf32>
    %cst_19 = arith.constant 1.000000e+00 : f32
    %48 = vector.broadcast %cst_19 : f32 to vector<2x64xf32>
    %49 = arith.addf %48, %47 : vector<2x64xf32>
    %50 = arith.divf %48, %49 : vector<2x64xf32>
    %51 = vector.extract_strided_slice %50 {offsets = [0, 0], sizes = [2, 32], strides = [1, 1]} : vector<2x64xf32> to vector<2x32xf32>
    %52 = vector.extract_strided_slice %50 {offsets = [0, 32], sizes = [2, 32], strides = [1, 1]} : vector<2x64xf32> to vector<2x32xf32>
    %53 = vector.extract_strided_slice %42 {offsets = [0, 64], sizes = [2, 32], strides = [1, 1]} : vector<2x128xf32> to vector<2x32xf32>
    %54 = vector.extract_strided_slice %41 {offsets = [0, 64], sizes = [2, 32], strides = [1, 1]} : vector<2x128xf32> to vector<2x32xf32>
    %55 = arith.mulf %51, %54 : vector<2x32xf32>
    %56 = arith.addf %53, %55 : vector<2x32xf32>
    %57 = math.tanh %56 : vector<2x32xf32>
    %cst_20 = arith.constant 1.000000e+00 : f32
    %58 = vector.broadcast %cst_20 : f32 to vector<2x32xf32>
    %59 = arith.subf %58, %52 : vector<2x32xf32>
    %60 = arith.mulf %59, %57 : vector<2x32xf32>
    %61 = arith.mulf %52, %39 : vector<2x32xf32>
    %62 = arith.addf %60, %61 : vector<2x32xf32>
    %cst_21 = arith.constant dense<0.000000e+00> : vector<2x128xf32>
    %63 = tpu.matmul %62, %12, %cst_21 {dimension_numbers = #tpu.dot_dimension_numbers<[1], [0], [0], [1], [0, 0, 1, 1], [], []>} : vector<2x32xf32>, vector<32x128xf32>, vector<2x128xf32> -> vector<2x128xf32>
    %64 = arith.addf %63, %15 : vector<2x128xf32>
    %65 = vector.extract_strided_slice %6 {offsets = [4, 0], sizes = [2, 128], strides = [1, 1]} : vector<12x128xf32> to vector<2x128xf32>
    %66 = vector.extract_strided_slice %65 {offsets = [0, 0], sizes = [2, 64], strides = [1, 1]} : vector<2x128xf32> to vector<2x64xf32>
    %67 = vector.extract_strided_slice %64 {offsets = [0, 0], sizes = [2, 64], strides = [1, 1]} : vector<2x128xf32> to vector<2x64xf32>
    %68 = arith.addf %66, %67 : vector<2x64xf32>
    %69 = arith.negf %68 : vector<2x64xf32>
    %70 = math.exp %69 : vector<2x64xf32>
    %cst_22 = arith.constant 1.000000e+00 : f32
    %71 = vector.broadcast %cst_22 : f32 to vector<2x64xf32>
    %72 = arith.addf %71, %70 : vector<2x64xf32>
    %73 = arith.divf %71, %72 : vector<2x64xf32>
    %74 = vector.extract_strided_slice %73 {offsets = [0, 0], sizes = [2, 32], strides = [1, 1]} : vector<2x64xf32> to vector<2x32xf32>
    %75 = vector.extract_strided_slice %73 {offsets = [0, 32], sizes = [2, 32], strides = [1, 1]} : vector<2x64xf32> to vector<2x32xf32>
    %76 = vector.extract_strided_slice %65 {offsets = [0, 64], sizes = [2, 32], strides = [1, 1]} : vector<2x128xf32> to vector<2x32xf32>
    %77 = vector.extract_strided_slice %64 {offsets = [0, 64], sizes = [2, 32], strides = [1, 1]} : vector<2x128xf32> to vector<2x32xf32>
    %78 = arith.mulf %74, %77 : vector<2x32xf32>
    %79 = arith.addf %76, %78 : vector<2x32xf32>
    %80 = math.tanh %79 : vector<2x32xf32>
    %cst_23 = arith.constant 1.000000e+00 : f32
    %81 = vector.broadcast %cst_23 : f32 to vector<2x32xf32>
    %82 = arith.subf %81, %75 : vector<2x32xf32>
    %83 = arith.mulf %82, %80 : vector<2x32xf32>
    %84 = arith.mulf %75, %62 : vector<2x32xf32>
    %85 = arith.addf %83, %84 : vector<2x32xf32>
    %cst_24 = arith.constant dense<0.000000e+00> : vector<2x128xf32>
    %86 = tpu.matmul %85, %12, %cst_24 {dimension_numbers = #tpu.dot_dimension_numbers<[1], [0], [0], [1], [0, 0, 1, 1], [], []>} : vector<2x32xf32>, vector<32x128xf32>, vector<2x128xf32> -> vector<2x128xf32>
    %87 = arith.addf %86, %15 : vector<2x128xf32>
    %88 = vector.extract_strided_slice %6 {offsets = [6, 0], sizes = [2, 128], strides = [1, 1]} : vector<12x128xf32> to vector<2x128xf32>
    %89 = vector.extract_strided_slice %88 {offsets = [0, 0], sizes = [2, 64], strides = [1, 1]} : vector<2x128xf32> to vector<2x64xf32>
    %90 = vector.extract_strided_slice %87 {offsets = [0, 0], sizes = [2, 64], strides = [1, 1]} : vector<2x128xf32> to vector<2x64xf32>
    %91 = arith.addf %89, %90 : vector<2x64xf32>
    %92 = arith.negf %91 : vector<2x64xf32>
    %93 = math.exp %92 : vector<2x64xf32>
    %cst_25 = arith.constant 1.000000e+00 : f32
    %94 = vector.broadcast %cst_25 : f32 to vector<2x64xf32>
    %95 = arith.addf %94, %93 : vector<2x64xf32>
    %96 = arith.divf %94, %95 : vector<2x64xf32>
    %97 = vector.extract_strided_slice %96 {offsets = [0, 0], sizes = [2, 32], strides = [1, 1]} : vector<2x64xf32> to vector<2x32xf32>
    %98 = vector.extract_strided_slice %96 {offsets = [0, 32], sizes = [2, 32], strides = [1, 1]} : vector<2x64xf32> to vector<2x32xf32>
    %99 = vector.extract_strided_slice %88 {offsets = [0, 64], sizes = [2, 32], strides = [1, 1]} : vector<2x128xf32> to vector<2x32xf32>
    %100 = vector.extract_strided_slice %87 {offsets = [0, 64], sizes = [2, 32], strides = [1, 1]} : vector<2x128xf32> to vector<2x32xf32>
    %101 = arith.mulf %97, %100 : vector<2x32xf32>
    %102 = arith.addf %99, %101 : vector<2x32xf32>
    %103 = math.tanh %102 : vector<2x32xf32>
    %cst_26 = arith.constant 1.000000e+00 : f32
    %104 = vector.broadcast %cst_26 : f32 to vector<2x32xf32>
    %105 = arith.subf %104, %98 : vector<2x32xf32>
    %106 = arith.mulf %105, %103 : vector<2x32xf32>
    %107 = arith.mulf %98, %85 : vector<2x32xf32>
    %108 = arith.addf %106, %107 : vector<2x32xf32>
    %cst_27 = arith.constant dense<0.000000e+00> : vector<2x128xf32>
    %109 = tpu.matmul %108, %12, %cst_27 {dimension_numbers = #tpu.dot_dimension_numbers<[1], [0], [0], [1], [0, 0, 1, 1], [], []>} : vector<2x32xf32>, vector<32x128xf32>, vector<2x128xf32> -> vector<2x128xf32>
    %110 = arith.addf %109, %15 : vector<2x128xf32>
    %111 = vector.extract_strided_slice %6 {offsets = [8, 0], sizes = [2, 128], strides = [1, 1]} : vector<12x128xf32> to vector<2x128xf32>
    %112 = vector.extract_strided_slice %111 {offsets = [0, 0], sizes = [2, 64], strides = [1, 1]} : vector<2x128xf32> to vector<2x64xf32>
    %113 = vector.extract_strided_slice %110 {offsets = [0, 0], sizes = [2, 64], strides = [1, 1]} : vector<2x128xf32> to vector<2x64xf32>
    %114 = arith.addf %112, %113 : vector<2x64xf32>
    %115 = arith.negf %114 : vector<2x64xf32>
    %116 = math.exp %115 : vector<2x64xf32>
    %cst_28 = arith.constant 1.000000e+00 : f32
    %117 = vector.broadcast %cst_28 : f32 to vector<2x64xf32>
    %118 = arith.addf %117, %116 : vector<2x64xf32>
    %119 = arith.divf %117, %118 : vector<2x64xf32>
    %120 = vector.extract_strided_slice %119 {offsets = [0, 0], sizes = [2, 32], strides = [1, 1]} : vector<2x64xf32> to vector<2x32xf32>
    %121 = vector.extract_strided_slice %119 {offsets = [0, 32], sizes = [2, 32], strides = [1, 1]} : vector<2x64xf32> to vector<2x32xf32>
    %122 = vector.extract_strided_slice %111 {offsets = [0, 64], sizes = [2, 32], strides = [1, 1]} : vector<2x128xf32> to vector<2x32xf32>
    %123 = vector.extract_strided_slice %110 {offsets = [0, 64], sizes = [2, 32], strides = [1, 1]} : vector<2x128xf32> to vector<2x32xf32>
    %124 = arith.mulf %120, %123 : vector<2x32xf32>
    %125 = arith.addf %122, %124 : vector<2x32xf32>
    %126 = math.tanh %125 : vector<2x32xf32>
    %cst_29 = arith.constant 1.000000e+00 : f32
    %127 = vector.broadcast %cst_29 : f32 to vector<2x32xf32>
    %128 = arith.subf %127, %121 : vector<2x32xf32>
    %129 = arith.mulf %128, %126 : vector<2x32xf32>
    %130 = arith.mulf %121, %108 : vector<2x32xf32>
    %131 = arith.addf %129, %130 : vector<2x32xf32>
    %cst_30 = arith.constant dense<0.000000e+00> : vector<2x128xf32>
    %132 = tpu.matmul %131, %12, %cst_30 {dimension_numbers = #tpu.dot_dimension_numbers<[1], [0], [0], [1], [0, 0, 1, 1], [], []>} : vector<2x32xf32>, vector<32x128xf32>, vector<2x128xf32> -> vector<2x128xf32>
    %133 = arith.addf %132, %15 : vector<2x128xf32>
    %134 = vector.extract_strided_slice %6 {offsets = [10, 0], sizes = [2, 128], strides = [1, 1]} : vector<12x128xf32> to vector<2x128xf32>
    %135 = vector.extract_strided_slice %134 {offsets = [0, 0], sizes = [2, 64], strides = [1, 1]} : vector<2x128xf32> to vector<2x64xf32>
    %136 = vector.extract_strided_slice %133 {offsets = [0, 0], sizes = [2, 64], strides = [1, 1]} : vector<2x128xf32> to vector<2x64xf32>
    %137 = arith.addf %135, %136 : vector<2x64xf32>
    %138 = arith.negf %137 : vector<2x64xf32>
    %139 = math.exp %138 : vector<2x64xf32>
    %cst_31 = arith.constant 1.000000e+00 : f32
    %140 = vector.broadcast %cst_31 : f32 to vector<2x64xf32>
    %141 = arith.addf %140, %139 : vector<2x64xf32>
    %142 = arith.divf %140, %141 : vector<2x64xf32>
    %143 = vector.extract_strided_slice %142 {offsets = [0, 0], sizes = [2, 32], strides = [1, 1]} : vector<2x64xf32> to vector<2x32xf32>
    %144 = vector.extract_strided_slice %142 {offsets = [0, 32], sizes = [2, 32], strides = [1, 1]} : vector<2x64xf32> to vector<2x32xf32>
    %145 = vector.extract_strided_slice %134 {offsets = [0, 64], sizes = [2, 32], strides = [1, 1]} : vector<2x128xf32> to vector<2x32xf32>
    %146 = vector.extract_strided_slice %133 {offsets = [0, 64], sizes = [2, 32], strides = [1, 1]} : vector<2x128xf32> to vector<2x32xf32>
    %147 = arith.mulf %143, %146 : vector<2x32xf32>
    %148 = arith.addf %145, %147 : vector<2x32xf32>
    %149 = math.tanh %148 : vector<2x32xf32>
    %cst_32 = arith.constant 1.000000e+00 : f32
    %150 = vector.broadcast %cst_32 : f32 to vector<2x32xf32>
    %151 = arith.subf %150, %144 : vector<2x32xf32>
    %152 = arith.mulf %151, %149 : vector<2x32xf32>
    %153 = arith.mulf %144, %131 : vector<2x32xf32>
    %154 = arith.addf %152, %153 : vector<2x32xf32>
    %155 = tpu.concatenate %39, %62, %85, %108, %131, %154 in 0 : vector<2x32xf32>, vector<2x32xf32>, vector<2x32xf32>, vector<2x32xf32>, vector<2x32xf32>, vector<2x32xf32> -> vector<12x32xf32>
    %c0_33 = arith.constant 0 : index
    %c0_34 = arith.constant 0 : index
    %156 = vector.load %arg9[%c0_33, %c0_34] : memref<32x128xf32, #tpu.memory_space<vmem>>, vector<32x128xf32>
    %cst_35 = arith.constant dense<0.000000e+00> : vector<12x128xf32>
    %157 = tpu.matmul %155, %156, %cst_35 {dimension_numbers = #tpu.dot_dimension_numbers<[1], [0], [0], [1], [0, 0, 1, 1], [], []>} : vector<12x32xf32>, vector<32x128xf32>, vector<12x128xf32> -> vector<12x128xf32>
    %c0_36 = arith.constant 0 : index
    %c0_37 = arith.constant 0 : index
    %158 = vector.load %arg7[%c0_36, %c0_37] : memref<32x128xf32, #tpu.memory_space<vmem>>, vector<32x128xf32>
    %c0_38 = arith.constant 0 : index
    %c0_39 = arith.constant 0 : index
    %159 = vector.load %arg8[%c0_38, %c0_39] : memref<1x128xf32, #tpu.memory_space<vmem>>, vector<1x128xf32>
    %160 = vector.shape_cast %159 : vector<1x128xf32> to vector<1x128xf32>
    %161 = vector.broadcast %160 : vector<1x128xf32> to vector<2x128xf32>
    %cst_40 = arith.constant 0.000000e+00 : f32
    %162 = vector.broadcast %cst_40 : f32 to vector<2x32xf32>
    %cst_41 = arith.constant dense<0.000000e+00> : vector<2x128xf32>
    %163 = tpu.matmul %162, %158, %cst_41 {dimension_numbers = #tpu.dot_dimension_numbers<[1], [0], [0], [1], [0, 0, 1, 1], [], []>} : vector<2x32xf32>, vector<32x128xf32>, vector<2x128xf32> -> vector<2x128xf32>
    %164 = arith.addf %163, %161 : vector<2x128xf32>
    %165 = vector.extract_strided_slice %11 {offsets = [14, 0], sizes = [2, 128], strides = [1, 1]} : vector<16x128xf32> to vector<2x128xf32>
    %166 = vector.extract_strided_slice %165 {offsets = [0, 0], sizes = [2, 64], strides = [1, 1]} : vector<2x128xf32> to vector<2x64xf32>
    %167 = vector.extract_strided_slice %164 {offsets = [0, 0], sizes = [2, 64], strides = [1, 1]} : vector<2x128xf32> to vector<2x64xf32>
    %168 = arith.addf %166, %167 : vector<2x64xf32>
    %169 = arith.negf %168 : vector<2x64xf32>
    %170 = math.exp %169 : vector<2x64xf32>
    %cst_42 = arith.constant 1.000000e+00 : f32
    %171 = vector.broadcast %cst_42 : f32 to vector<2x64xf32>
    %172 = arith.addf %171, %170 : vector<2x64xf32>
    %173 = arith.divf %171, %172 : vector<2x64xf32>
    %174 = vector.extract_strided_slice %173 {offsets = [0, 0], sizes = [2, 32], strides = [1, 1]} : vector<2x64xf32> to vector<2x32xf32>
    %175 = vector.extract_strided_slice %173 {offsets = [0, 32], sizes = [2, 32], strides = [1, 1]} : vector<2x64xf32> to vector<2x32xf32>
    %176 = vector.extract_strided_slice %165 {offsets = [0, 64], sizes = [2, 32], strides = [1, 1]} : vector<2x128xf32> to vector<2x32xf32>
    %177 = vector.extract_strided_slice %164 {offsets = [0, 64], sizes = [2, 32], strides = [1, 1]} : vector<2x128xf32> to vector<2x32xf32>
    %178 = arith.mulf %174, %177 : vector<2x32xf32>
    %179 = arith.addf %176, %178 : vector<2x32xf32>
    %180 = math.tanh %179 : vector<2x32xf32>
    %cst_43 = arith.constant 1.000000e+00 : f32
    %181 = vector.broadcast %cst_43 : f32 to vector<2x32xf32>
    %182 = arith.subf %181, %175 : vector<2x32xf32>
    %183 = arith.mulf %182, %180 : vector<2x32xf32>
    %184 = arith.mulf %175, %162 : vector<2x32xf32>
    %185 = arith.addf %183, %184 : vector<2x32xf32>
    %cst_44 = arith.constant dense<0.000000e+00> : vector<2x128xf32>
    %186 = tpu.matmul %185, %158, %cst_44 {dimension_numbers = #tpu.dot_dimension_numbers<[1], [0], [0], [1], [0, 0, 1, 1], [], []>} : vector<2x32xf32>, vector<32x128xf32>, vector<2x128xf32> -> vector<2x128xf32>
    %187 = arith.addf %186, %161 : vector<2x128xf32>
    %188 = vector.extract_strided_slice %11 {offsets = [12, 0], sizes = [2, 128], strides = [1, 1]} : vector<16x128xf32> to vector<2x128xf32>
    %189 = vector.extract_strided_slice %188 {offsets = [0, 0], sizes = [2, 64], strides = [1, 1]} : vector<2x128xf32> to vector<2x64xf32>
    %190 = vector.extract_strided_slice %187 {offsets = [0, 0], sizes = [2, 64], strides = [1, 1]} : vector<2x128xf32> to vector<2x64xf32>
    %191 = arith.addf %189, %190 : vector<2x64xf32>
    %192 = arith.negf %191 : vector<2x64xf32>
    %193 = math.exp %192 : vector<2x64xf32>
    %cst_45 = arith.constant 1.000000e+00 : f32
    %194 = vector.broadcast %cst_45 : f32 to vector<2x64xf32>
    %195 = arith.addf %194, %193 : vector<2x64xf32>
    %196 = arith.divf %194, %195 : vector<2x64xf32>
    %197 = vector.extract_strided_slice %196 {offsets = [0, 0], sizes = [2, 32], strides = [1, 1]} : vector<2x64xf32> to vector<2x32xf32>
    %198 = vector.extract_strided_slice %196 {offsets = [0, 32], sizes = [2, 32], strides = [1, 1]} : vector<2x64xf32> to vector<2x32xf32>
    %199 = vector.extract_strided_slice %188 {offsets = [0, 64], sizes = [2, 32], strides = [1, 1]} : vector<2x128xf32> to vector<2x32xf32>
    %200 = vector.extract_strided_slice %187 {offsets = [0, 64], sizes = [2, 32], strides = [1, 1]} : vector<2x128xf32> to vector<2x32xf32>
    %201 = arith.mulf %197, %200 : vector<2x32xf32>
    %202 = arith.addf %199, %201 : vector<2x32xf32>
    %203 = math.tanh %202 : vector<2x32xf32>
    %cst_46 = arith.constant 1.000000e+00 : f32
    %204 = vector.broadcast %cst_46 : f32 to vector<2x32xf32>
    %205 = arith.subf %204, %198 : vector<2x32xf32>
    %206 = arith.mulf %205, %203 : vector<2x32xf32>
    %207 = arith.mulf %198, %185 : vector<2x32xf32>
    %208 = arith.addf %206, %207 : vector<2x32xf32>
    %cst_47 = arith.constant dense<0.000000e+00> : vector<2x128xf32>
    %209 = tpu.matmul %208, %158, %cst_47 {dimension_numbers = #tpu.dot_dimension_numbers<[1], [0], [0], [1], [0, 0, 1, 1], [], []>} : vector<2x32xf32>, vector<32x128xf32>, vector<2x128xf32> -> vector<2x128xf32>
    %210 = arith.addf %209, %161 : vector<2x128xf32>
    %211 = vector.extract_strided_slice %11 {offsets = [10, 0], sizes = [2, 128], strides = [1, 1]} : vector<16x128xf32> to vector<2x128xf32>
    %212 = vector.extract_strided_slice %211 {offsets = [0, 0], sizes = [2, 64], strides = [1, 1]} : vector<2x128xf32> to vector<2x64xf32>
    %213 = vector.extract_strided_slice %210 {offsets = [0, 0], sizes = [2, 64], strides = [1, 1]} : vector<2x128xf32> to vector<2x64xf32>
    %214 = arith.addf %212, %213 : vector<2x64xf32>
    %215 = arith.negf %214 : vector<2x64xf32>
    %216 = math.exp %215 : vector<2x64xf32>
    %cst_48 = arith.constant 1.000000e+00 : f32
    %217 = vector.broadcast %cst_48 : f32 to vector<2x64xf32>
    %218 = arith.addf %217, %216 : vector<2x64xf32>
    %219 = arith.divf %217, %218 : vector<2x64xf32>
    %220 = vector.extract_strided_slice %219 {offsets = [0, 0], sizes = [2, 32], strides = [1, 1]} : vector<2x64xf32> to vector<2x32xf32>
    %221 = vector.extract_strided_slice %219 {offsets = [0, 32], sizes = [2, 32], strides = [1, 1]} : vector<2x64xf32> to vector<2x32xf32>
    %222 = vector.extract_strided_slice %211 {offsets = [0, 64], sizes = [2, 32], strides = [1, 1]} : vector<2x128xf32> to vector<2x32xf32>
    %223 = vector.extract_strided_slice %210 {offsets = [0, 64], sizes = [2, 32], strides = [1, 1]} : vector<2x128xf32> to vector<2x32xf32>
    %224 = arith.mulf %220, %223 : vector<2x32xf32>
    %225 = arith.addf %222, %224 : vector<2x32xf32>
    %226 = math.tanh %225 : vector<2x32xf32>
    %cst_49 = arith.constant 1.000000e+00 : f32
    %227 = vector.broadcast %cst_49 : f32 to vector<2x32xf32>
    %228 = arith.subf %227, %221 : vector<2x32xf32>
    %229 = arith.mulf %228, %226 : vector<2x32xf32>
    %230 = arith.mulf %221, %208 : vector<2x32xf32>
    %231 = arith.addf %229, %230 : vector<2x32xf32>
    %cst_50 = arith.constant dense<0.000000e+00> : vector<2x128xf32>
    %232 = tpu.matmul %231, %158, %cst_50 {dimension_numbers = #tpu.dot_dimension_numbers<[1], [0], [0], [1], [0, 0, 1, 1], [], []>} : vector<2x32xf32>, vector<32x128xf32>, vector<2x128xf32> -> vector<2x128xf32>
    %233 = arith.addf %232, %161 : vector<2x128xf32>
    %234 = vector.extract_strided_slice %11 {offsets = [8, 0], sizes = [2, 128], strides = [1, 1]} : vector<16x128xf32> to vector<2x128xf32>
    %235 = vector.extract_strided_slice %234 {offsets = [0, 0], sizes = [2, 64], strides = [1, 1]} : vector<2x128xf32> to vector<2x64xf32>
    %236 = vector.extract_strided_slice %233 {offsets = [0, 0], sizes = [2, 64], strides = [1, 1]} : vector<2x128xf32> to vector<2x64xf32>
    %237 = arith.addf %235, %236 : vector<2x64xf32>
    %238 = arith.negf %237 : vector<2x64xf32>
    %239 = math.exp %238 : vector<2x64xf32>
    %cst_51 = arith.constant 1.000000e+00 : f32
    %240 = vector.broadcast %cst_51 : f32 to vector<2x64xf32>
    %241 = arith.addf %240, %239 : vector<2x64xf32>
    %242 = arith.divf %240, %241 : vector<2x64xf32>
    %243 = vector.extract_strided_slice %242 {offsets = [0, 0], sizes = [2, 32], strides = [1, 1]} : vector<2x64xf32> to vector<2x32xf32>
    %244 = vector.extract_strided_slice %242 {offsets = [0, 32], sizes = [2, 32], strides = [1, 1]} : vector<2x64xf32> to vector<2x32xf32>
    %245 = vector.extract_strided_slice %234 {offsets = [0, 64], sizes = [2, 32], strides = [1, 1]} : vector<2x128xf32> to vector<2x32xf32>
    %246 = vector.extract_strided_slice %233 {offsets = [0, 64], sizes = [2, 32], strides = [1, 1]} : vector<2x128xf32> to vector<2x32xf32>
    %247 = arith.mulf %243, %246 : vector<2x32xf32>
    %248 = arith.addf %245, %247 : vector<2x32xf32>
    %249 = math.tanh %248 : vector<2x32xf32>
    %cst_52 = arith.constant 1.000000e+00 : f32
    %250 = vector.broadcast %cst_52 : f32 to vector<2x32xf32>
    %251 = arith.subf %250, %244 : vector<2x32xf32>
    %252 = arith.mulf %251, %249 : vector<2x32xf32>
    %253 = arith.mulf %244, %231 : vector<2x32xf32>
    %254 = arith.addf %252, %253 : vector<2x32xf32>
    %cst_53 = arith.constant dense<0.000000e+00> : vector<2x128xf32>
    %255 = tpu.matmul %254, %158, %cst_53 {dimension_numbers = #tpu.dot_dimension_numbers<[1], [0], [0], [1], [0, 0, 1, 1], [], []>} : vector<2x32xf32>, vector<32x128xf32>, vector<2x128xf32> -> vector<2x128xf32>
    %256 = arith.addf %255, %161 : vector<2x128xf32>
    %257 = vector.extract_strided_slice %11 {offsets = [6, 0], sizes = [2, 128], strides = [1, 1]} : vector<16x128xf32> to vector<2x128xf32>
    %258 = vector.extract_strided_slice %257 {offsets = [0, 0], sizes = [2, 64], strides = [1, 1]} : vector<2x128xf32> to vector<2x64xf32>
    %259 = vector.extract_strided_slice %256 {offsets = [0, 0], sizes = [2, 64], strides = [1, 1]} : vector<2x128xf32> to vector<2x64xf32>
    %260 = arith.addf %258, %259 : vector<2x64xf32>
    %261 = arith.negf %260 : vector<2x64xf32>
    %262 = math.exp %261 : vector<2x64xf32>
    %cst_54 = arith.constant 1.000000e+00 : f32
    %263 = vector.broadcast %cst_54 : f32 to vector<2x64xf32>
    %264 = arith.addf %263, %262 : vector<2x64xf32>
    %265 = arith.divf %263, %264 : vector<2x64xf32>
    %266 = vector.extract_strided_slice %265 {offsets = [0, 0], sizes = [2, 32], strides = [1, 1]} : vector<2x64xf32> to vector<2x32xf32>
    %267 = vector.extract_strided_slice %265 {offsets = [0, 32], sizes = [2, 32], strides = [1, 1]} : vector<2x64xf32> to vector<2x32xf32>
    %268 = vector.extract_strided_slice %257 {offsets = [0, 64], sizes = [2, 32], strides = [1, 1]} : vector<2x128xf32> to vector<2x32xf32>
    %269 = vector.extract_strided_slice %256 {offsets = [0, 64], sizes = [2, 32], strides = [1, 1]} : vector<2x128xf32> to vector<2x32xf32>
    %270 = arith.mulf %266, %269 : vector<2x32xf32>
    %271 = arith.addf %268, %270 : vector<2x32xf32>
    %272 = math.tanh %271 : vector<2x32xf32>
    %cst_55 = arith.constant 1.000000e+00 : f32
    %273 = vector.broadcast %cst_55 : f32 to vector<2x32xf32>
    %274 = arith.subf %273, %267 : vector<2x32xf32>
    %275 = arith.mulf %274, %272 : vector<2x32xf32>
    %276 = arith.mulf %267, %254 : vector<2x32xf32>
    %277 = arith.addf %275, %276 : vector<2x32xf32>
    %cst_56 = arith.constant dense<0.000000e+00> : vector<2x128xf32>
    %278 = tpu.matmul %277, %158, %cst_56 {dimension_numbers = #tpu.dot_dimension_numbers<[1], [0], [0], [1], [0, 0, 1, 1], [], []>} : vector<2x32xf32>, vector<32x128xf32>, vector<2x128xf32> -> vector<2x128xf32>
    %279 = arith.addf %278, %161 : vector<2x128xf32>
    %280 = vector.extract_strided_slice %11 {offsets = [4, 0], sizes = [2, 128], strides = [1, 1]} : vector<16x128xf32> to vector<2x128xf32>
    %281 = vector.extract_strided_slice %280 {offsets = [0, 0], sizes = [2, 64], strides = [1, 1]} : vector<2x128xf32> to vector<2x64xf32>
    %282 = vector.extract_strided_slice %279 {offsets = [0, 0], sizes = [2, 64], strides = [1, 1]} : vector<2x128xf32> to vector<2x64xf32>
    %283 = arith.addf %281, %282 : vector<2x64xf32>
    %284 = arith.negf %283 : vector<2x64xf32>
    %285 = math.exp %284 : vector<2x64xf32>
    %cst_57 = arith.constant 1.000000e+00 : f32
    %286 = vector.broadcast %cst_57 : f32 to vector<2x64xf32>
    %287 = arith.addf %286, %285 : vector<2x64xf32>
    %288 = arith.divf %286, %287 : vector<2x64xf32>
    %289 = vector.extract_strided_slice %288 {offsets = [0, 0], sizes = [2, 32], strides = [1, 1]} : vector<2x64xf32> to vector<2x32xf32>
    %290 = vector.extract_strided_slice %288 {offsets = [0, 32], sizes = [2, 32], strides = [1, 1]} : vector<2x64xf32> to vector<2x32xf32>
    %291 = vector.extract_strided_slice %280 {offsets = [0, 64], sizes = [2, 32], strides = [1, 1]} : vector<2x128xf32> to vector<2x32xf32>
    %292 = vector.extract_strided_slice %279 {offsets = [0, 64], sizes = [2, 32], strides = [1, 1]} : vector<2x128xf32> to vector<2x32xf32>
    %293 = arith.mulf %289, %292 : vector<2x32xf32>
    %294 = arith.addf %291, %293 : vector<2x32xf32>
    %295 = math.tanh %294 : vector<2x32xf32>
    %cst_58 = arith.constant 1.000000e+00 : f32
    %296 = vector.broadcast %cst_58 : f32 to vector<2x32xf32>
    %297 = arith.subf %296, %290 : vector<2x32xf32>
    %298 = arith.mulf %297, %295 : vector<2x32xf32>
    %299 = arith.mulf %290, %277 : vector<2x32xf32>
    %300 = arith.addf %298, %299 : vector<2x32xf32>
    %cst_59 = arith.constant dense<0.000000e+00> : vector<2x128xf32>
    %301 = tpu.matmul %300, %158, %cst_59 {dimension_numbers = #tpu.dot_dimension_numbers<[1], [0], [0], [1], [0, 0, 1, 1], [], []>} : vector<2x32xf32>, vector<32x128xf32>, vector<2x128xf32> -> vector<2x128xf32>
    %302 = arith.addf %301, %161 : vector<2x128xf32>
    %303 = vector.extract_strided_slice %11 {offsets = [2, 0], sizes = [2, 128], strides = [1, 1]} : vector<16x128xf32> to vector<2x128xf32>
    %304 = vector.extract_strided_slice %303 {offsets = [0, 0], sizes = [2, 64], strides = [1, 1]} : vector<2x128xf32> to vector<2x64xf32>
    %305 = vector.extract_strided_slice %302 {offsets = [0, 0], sizes = [2, 64], strides = [1, 1]} : vector<2x128xf32> to vector<2x64xf32>
    %306 = arith.addf %304, %305 : vector<2x64xf32>
    %307 = arith.negf %306 : vector<2x64xf32>
    %308 = math.exp %307 : vector<2x64xf32>
    %cst_60 = arith.constant 1.000000e+00 : f32
    %309 = vector.broadcast %cst_60 : f32 to vector<2x64xf32>
    %310 = arith.addf %309, %308 : vector<2x64xf32>
    %311 = arith.divf %309, %310 : vector<2x64xf32>
    %312 = vector.extract_strided_slice %311 {offsets = [0, 0], sizes = [2, 32], strides = [1, 1]} : vector<2x64xf32> to vector<2x32xf32>
    %313 = vector.extract_strided_slice %311 {offsets = [0, 32], sizes = [2, 32], strides = [1, 1]} : vector<2x64xf32> to vector<2x32xf32>
    %314 = vector.extract_strided_slice %303 {offsets = [0, 64], sizes = [2, 32], strides = [1, 1]} : vector<2x128xf32> to vector<2x32xf32>
    %315 = vector.extract_strided_slice %302 {offsets = [0, 64], sizes = [2, 32], strides = [1, 1]} : vector<2x128xf32> to vector<2x32xf32>
    %316 = arith.mulf %312, %315 : vector<2x32xf32>
    %317 = arith.addf %314, %316 : vector<2x32xf32>
    %318 = math.tanh %317 : vector<2x32xf32>
    %cst_61 = arith.constant 1.000000e+00 : f32
    %319 = vector.broadcast %cst_61 : f32 to vector<2x32xf32>
    %320 = arith.subf %319, %313 : vector<2x32xf32>
    %321 = arith.mulf %320, %318 : vector<2x32xf32>
    %322 = arith.mulf %313, %300 : vector<2x32xf32>
    %323 = arith.addf %321, %322 : vector<2x32xf32>
    %cst_62 = arith.constant dense<0.000000e+00> : vector<2x128xf32>
    %324 = tpu.matmul %323, %158, %cst_62 {dimension_numbers = #tpu.dot_dimension_numbers<[1], [0], [0], [1], [0, 0, 1, 1], [], []>} : vector<2x32xf32>, vector<32x128xf32>, vector<2x128xf32> -> vector<2x128xf32>
    %325 = arith.addf %324, %161 : vector<2x128xf32>
    %326 = vector.extract_strided_slice %11 {offsets = [0, 0], sizes = [2, 128], strides = [1, 1]} : vector<16x128xf32> to vector<2x128xf32>
    %327 = vector.extract_strided_slice %326 {offsets = [0, 0], sizes = [2, 64], strides = [1, 1]} : vector<2x128xf32> to vector<2x64xf32>
    %328 = vector.extract_strided_slice %325 {offsets = [0, 0], sizes = [2, 64], strides = [1, 1]} : vector<2x128xf32> to vector<2x64xf32>
    %329 = arith.addf %327, %328 : vector<2x64xf32>
    %330 = arith.negf %329 : vector<2x64xf32>
    %331 = math.exp %330 : vector<2x64xf32>
    %cst_63 = arith.constant 1.000000e+00 : f32
    %332 = vector.broadcast %cst_63 : f32 to vector<2x64xf32>
    %333 = arith.addf %332, %331 : vector<2x64xf32>
    %334 = arith.divf %332, %333 : vector<2x64xf32>
    %335 = vector.extract_strided_slice %334 {offsets = [0, 0], sizes = [2, 32], strides = [1, 1]} : vector<2x64xf32> to vector<2x32xf32>
    %336 = vector.extract_strided_slice %334 {offsets = [0, 32], sizes = [2, 32], strides = [1, 1]} : vector<2x64xf32> to vector<2x32xf32>
    %337 = vector.extract_strided_slice %326 {offsets = [0, 64], sizes = [2, 32], strides = [1, 1]} : vector<2x128xf32> to vector<2x32xf32>
    %338 = vector.extract_strided_slice %325 {offsets = [0, 64], sizes = [2, 32], strides = [1, 1]} : vector<2x128xf32> to vector<2x32xf32>
    %339 = arith.mulf %335, %338 : vector<2x32xf32>
    %340 = arith.addf %337, %339 : vector<2x32xf32>
    %341 = math.tanh %340 : vector<2x32xf32>
    %cst_64 = arith.constant 1.000000e+00 : f32
    %342 = vector.broadcast %cst_64 : f32 to vector<2x32xf32>
    %343 = arith.subf %342, %336 : vector<2x32xf32>
    %344 = arith.mulf %343, %341 : vector<2x32xf32>
    %345 = arith.mulf %336, %323 : vector<2x32xf32>
    %346 = arith.addf %344, %345 : vector<2x32xf32>
    %347 = tpu.concatenate %346, %323, %300, %277, %254, %231 in 0 : vector<2x32xf32>, vector<2x32xf32>, vector<2x32xf32>, vector<2x32xf32>, vector<2x32xf32>, vector<2x32xf32> -> vector<12x32xf32>
    %c0_65 = arith.constant 0 : index
    %c0_66 = arith.constant 0 : index
    %348 = vector.load %arg10[%c0_65, %c0_66] : memref<32x128xf32, #tpu.memory_space<vmem>>, vector<32x128xf32>
    %cst_67 = arith.constant dense<0.000000e+00> : vector<12x128xf32>
    %349 = tpu.matmul %347, %348, %cst_67 {dimension_numbers = #tpu.dot_dimension_numbers<[1], [0], [0], [1], [0, 0, 1, 1], [], []>} : vector<12x32xf32>, vector<32x128xf32>, vector<12x128xf32> -> vector<12x128xf32>
    %350 = arith.addf %157, %349 : vector<12x128xf32>
    %c0_68 = arith.constant 0 : index
    %c0_69 = arith.constant 0 : index
    %351 = vector.load %arg11[%c0_68, %c0_69] : memref<1x128xf32, #tpu.memory_space<vmem>>, vector<1x128xf32>
    %352 = vector.broadcast %351 : vector<1x128xf32> to vector<12x128xf32>
    %353 = arith.addf %350, %352 : vector<12x128xf32>
    %c0_70 = arith.constant 0 : index
    %c0_71 = arith.constant 0 : index
    %354 = vector.load %arg12[%c0_70, %c0_71] : memref<32x128xf32, #tpu.memory_space<vmem>>, vector<32x128xf32>
    %c0_72 = arith.constant 0 : index
    %c0_73 = arith.constant 0 : index
    %355 = vector.load %arg13[%c0_72, %c0_73] : memref<1x128xf32, #tpu.memory_space<vmem>>, vector<1x128xf32>
    %356 = vector.shape_cast %355 : vector<1x128xf32> to vector<1x128xf32>
    %357 = vector.broadcast %356 : vector<1x128xf32> to vector<2x128xf32>
    %cst_74 = arith.constant 0.000000e+00 : f32
    %358 = vector.broadcast %cst_74 : f32 to vector<2x32xf32>
    %cst_75 = arith.constant dense<0.000000e+00> : vector<2x128xf32>
    %359 = tpu.matmul %358, %354, %cst_75 {dimension_numbers = #tpu.dot_dimension_numbers<[1], [0], [0], [1], [0, 0, 1, 1], [], []>} : vector<2x32xf32>, vector<32x128xf32>, vector<2x128xf32> -> vector<2x128xf32>
    %360 = arith.addf %359, %357 : vector<2x128xf32>
    %361 = vector.extract_strided_slice %353 {offsets = [0, 0], sizes = [2, 128], strides = [1, 1]} : vector<12x128xf32> to vector<2x128xf32>
    %362 = vector.extract_strided_slice %361 {offsets = [0, 0], sizes = [2, 64], strides = [1, 1]} : vector<2x128xf32> to vector<2x64xf32>
    %363 = vector.extract_strided_slice %360 {offsets = [0, 0], sizes = [2, 64], strides = [1, 1]} : vector<2x128xf32> to vector<2x64xf32>
    %364 = arith.addf %362, %363 : vector<2x64xf32>
    %365 = arith.negf %364 : vector<2x64xf32>
    %366 = math.exp %365 : vector<2x64xf32>
    %cst_76 = arith.constant 1.000000e+00 : f32
    %367 = vector.broadcast %cst_76 : f32 to vector<2x64xf32>
    %368 = arith.addf %367, %366 : vector<2x64xf32>
    %369 = arith.divf %367, %368 : vector<2x64xf32>
    %370 = vector.extract_strided_slice %369 {offsets = [0, 0], sizes = [2, 32], strides = [1, 1]} : vector<2x64xf32> to vector<2x32xf32>
    %371 = vector.extract_strided_slice %369 {offsets = [0, 32], sizes = [2, 32], strides = [1, 1]} : vector<2x64xf32> to vector<2x32xf32>
    %372 = vector.extract_strided_slice %361 {offsets = [0, 64], sizes = [2, 32], strides = [1, 1]} : vector<2x128xf32> to vector<2x32xf32>
    %373 = vector.extract_strided_slice %360 {offsets = [0, 64], sizes = [2, 32], strides = [1, 1]} : vector<2x128xf32> to vector<2x32xf32>
    %374 = arith.mulf %370, %373 : vector<2x32xf32>
    %375 = arith.addf %372, %374 : vector<2x32xf32>
    %376 = math.tanh %375 : vector<2x32xf32>
    %cst_77 = arith.constant 1.000000e+00 : f32
    %377 = vector.broadcast %cst_77 : f32 to vector<2x32xf32>
    %378 = arith.subf %377, %371 : vector<2x32xf32>
    %379 = arith.mulf %378, %376 : vector<2x32xf32>
    %380 = arith.mulf %371, %358 : vector<2x32xf32>
    %381 = arith.addf %379, %380 : vector<2x32xf32>
    %cst_78 = arith.constant dense<0.000000e+00> : vector<2x128xf32>
    %382 = tpu.matmul %381, %354, %cst_78 {dimension_numbers = #tpu.dot_dimension_numbers<[1], [0], [0], [1], [0, 0, 1, 1], [], []>} : vector<2x32xf32>, vector<32x128xf32>, vector<2x128xf32> -> vector<2x128xf32>
    %383 = arith.addf %382, %357 : vector<2x128xf32>
    %384 = vector.extract_strided_slice %353 {offsets = [2, 0], sizes = [2, 128], strides = [1, 1]} : vector<12x128xf32> to vector<2x128xf32>
    %385 = vector.extract_strided_slice %384 {offsets = [0, 0], sizes = [2, 64], strides = [1, 1]} : vector<2x128xf32> to vector<2x64xf32>
    %386 = vector.extract_strided_slice %383 {offsets = [0, 0], sizes = [2, 64], strides = [1, 1]} : vector<2x128xf32> to vector<2x64xf32>
    %387 = arith.addf %385, %386 : vector<2x64xf32>
    %388 = arith.negf %387 : vector<2x64xf32>
    %389 = math.exp %388 : vector<2x64xf32>
    %cst_79 = arith.constant 1.000000e+00 : f32
    %390 = vector.broadcast %cst_79 : f32 to vector<2x64xf32>
    %391 = arith.addf %390, %389 : vector<2x64xf32>
    %392 = arith.divf %390, %391 : vector<2x64xf32>
    %393 = vector.extract_strided_slice %392 {offsets = [0, 0], sizes = [2, 32], strides = [1, 1]} : vector<2x64xf32> to vector<2x32xf32>
    %394 = vector.extract_strided_slice %392 {offsets = [0, 32], sizes = [2, 32], strides = [1, 1]} : vector<2x64xf32> to vector<2x32xf32>
    %395 = vector.extract_strided_slice %384 {offsets = [0, 64], sizes = [2, 32], strides = [1, 1]} : vector<2x128xf32> to vector<2x32xf32>
    %396 = vector.extract_strided_slice %383 {offsets = [0, 64], sizes = [2, 32], strides = [1, 1]} : vector<2x128xf32> to vector<2x32xf32>
    %397 = arith.mulf %393, %396 : vector<2x32xf32>
    %398 = arith.addf %395, %397 : vector<2x32xf32>
    %399 = math.tanh %398 : vector<2x32xf32>
    %cst_80 = arith.constant 1.000000e+00 : f32
    %400 = vector.broadcast %cst_80 : f32 to vector<2x32xf32>
    %401 = arith.subf %400, %394 : vector<2x32xf32>
    %402 = arith.mulf %401, %399 : vector<2x32xf32>
    %403 = arith.mulf %394, %381 : vector<2x32xf32>
    %404 = arith.addf %402, %403 : vector<2x32xf32>
    %cst_81 = arith.constant dense<0.000000e+00> : vector<2x128xf32>
    %405 = tpu.matmul %404, %354, %cst_81 {dimension_numbers = #tpu.dot_dimension_numbers<[1], [0], [0], [1], [0, 0, 1, 1], [], []>} : vector<2x32xf32>, vector<32x128xf32>, vector<2x128xf32> -> vector<2x128xf32>
    %406 = arith.addf %405, %357 : vector<2x128xf32>
    %407 = vector.extract_strided_slice %353 {offsets = [4, 0], sizes = [2, 128], strides = [1, 1]} : vector<12x128xf32> to vector<2x128xf32>
    %408 = vector.extract_strided_slice %407 {offsets = [0, 0], sizes = [2, 64], strides = [1, 1]} : vector<2x128xf32> to vector<2x64xf32>
    %409 = vector.extract_strided_slice %406 {offsets = [0, 0], sizes = [2, 64], strides = [1, 1]} : vector<2x128xf32> to vector<2x64xf32>
    %410 = arith.addf %408, %409 : vector<2x64xf32>
    %411 = arith.negf %410 : vector<2x64xf32>
    %412 = math.exp %411 : vector<2x64xf32>
    %cst_82 = arith.constant 1.000000e+00 : f32
    %413 = vector.broadcast %cst_82 : f32 to vector<2x64xf32>
    %414 = arith.addf %413, %412 : vector<2x64xf32>
    %415 = arith.divf %413, %414 : vector<2x64xf32>
    %416 = vector.extract_strided_slice %415 {offsets = [0, 0], sizes = [2, 32], strides = [1, 1]} : vector<2x64xf32> to vector<2x32xf32>
    %417 = vector.extract_strided_slice %415 {offsets = [0, 32], sizes = [2, 32], strides = [1, 1]} : vector<2x64xf32> to vector<2x32xf32>
    %418 = vector.extract_strided_slice %407 {offsets = [0, 64], sizes = [2, 32], strides = [1, 1]} : vector<2x128xf32> to vector<2x32xf32>
    %419 = vector.extract_strided_slice %406 {offsets = [0, 64], sizes = [2, 32], strides = [1, 1]} : vector<2x128xf32> to vector<2x32xf32>
    %420 = arith.mulf %416, %419 : vector<2x32xf32>
    %421 = arith.addf %418, %420 : vector<2x32xf32>
    %422 = math.tanh %421 : vector<2x32xf32>
    %cst_83 = arith.constant 1.000000e+00 : f32
    %423 = vector.broadcast %cst_83 : f32 to vector<2x32xf32>
    %424 = arith.subf %423, %417 : vector<2x32xf32>
    %425 = arith.mulf %424, %422 : vector<2x32xf32>
    %426 = arith.mulf %417, %404 : vector<2x32xf32>
    %427 = arith.addf %425, %426 : vector<2x32xf32>
    %cst_84 = arith.constant dense<0.000000e+00> : vector<2x128xf32>
    %428 = tpu.matmul %427, %354, %cst_84 {dimension_numbers = #tpu.dot_dimension_numbers<[1], [0], [0], [1], [0, 0, 1, 1], [], []>} : vector<2x32xf32>, vector<32x128xf32>, vector<2x128xf32> -> vector<2x128xf32>
    %429 = arith.addf %428, %357 : vector<2x128xf32>
    %430 = vector.extract_strided_slice %353 {offsets = [6, 0], sizes = [2, 128], strides = [1, 1]} : vector<12x128xf32> to vector<2x128xf32>
    %431 = vector.extract_strided_slice %430 {offsets = [0, 0], sizes = [2, 64], strides = [1, 1]} : vector<2x128xf32> to vector<2x64xf32>
    %432 = vector.extract_strided_slice %429 {offsets = [0, 0], sizes = [2, 64], strides = [1, 1]} : vector<2x128xf32> to vector<2x64xf32>
    %433 = arith.addf %431, %432 : vector<2x64xf32>
    %434 = arith.negf %433 : vector<2x64xf32>
    %435 = math.exp %434 : vector<2x64xf32>
    %cst_85 = arith.constant 1.000000e+00 : f32
    %436 = vector.broadcast %cst_85 : f32 to vector<2x64xf32>
    %437 = arith.addf %436, %435 : vector<2x64xf32>
    %438 = arith.divf %436, %437 : vector<2x64xf32>
    %439 = vector.extract_strided_slice %438 {offsets = [0, 0], sizes = [2, 32], strides = [1, 1]} : vector<2x64xf32> to vector<2x32xf32>
    %440 = vector.extract_strided_slice %438 {offsets = [0, 32], sizes = [2, 32], strides = [1, 1]} : vector<2x64xf32> to vector<2x32xf32>
    %441 = vector.extract_strided_slice %430 {offsets = [0, 64], sizes = [2, 32], strides = [1, 1]} : vector<2x128xf32> to vector<2x32xf32>
    %442 = vector.extract_strided_slice %429 {offsets = [0, 64], sizes = [2, 32], strides = [1, 1]} : vector<2x128xf32> to vector<2x32xf32>
    %443 = arith.mulf %439, %442 : vector<2x32xf32>
    %444 = arith.addf %441, %443 : vector<2x32xf32>
    %445 = math.tanh %444 : vector<2x32xf32>
    %cst_86 = arith.constant 1.000000e+00 : f32
    %446 = vector.broadcast %cst_86 : f32 to vector<2x32xf32>
    %447 = arith.subf %446, %440 : vector<2x32xf32>
    %448 = arith.mulf %447, %445 : vector<2x32xf32>
    %449 = arith.mulf %440, %427 : vector<2x32xf32>
    %450 = arith.addf %448, %449 : vector<2x32xf32>
    %cst_87 = arith.constant dense<0.000000e+00> : vector<2x128xf32>
    %451 = tpu.matmul %450, %354, %cst_87 {dimension_numbers = #tpu.dot_dimension_numbers<[1], [0], [0], [1], [0, 0, 1, 1], [], []>} : vector<2x32xf32>, vector<32x128xf32>, vector<2x128xf32> -> vector<2x128xf32>
    %452 = arith.addf %451, %357 : vector<2x128xf32>
    %453 = vector.extract_strided_slice %353 {offsets = [8, 0], sizes = [2, 128], strides = [1, 1]} : vector<12x128xf32> to vector<2x128xf32>
    %454 = vector.extract_strided_slice %453 {offsets = [0, 0], sizes = [2, 64], strides = [1, 1]} : vector<2x128xf32> to vector<2x64xf32>
    %455 = vector.extract_strided_slice %452 {offsets = [0, 0], sizes = [2, 64], strides = [1, 1]} : vector<2x128xf32> to vector<2x64xf32>
    %456 = arith.addf %454, %455 : vector<2x64xf32>
    %457 = arith.negf %456 : vector<2x64xf32>
    %458 = math.exp %457 : vector<2x64xf32>
    %cst_88 = arith.constant 1.000000e+00 : f32
    %459 = vector.broadcast %cst_88 : f32 to vector<2x64xf32>
    %460 = arith.addf %459, %458 : vector<2x64xf32>
    %461 = arith.divf %459, %460 : vector<2x64xf32>
    %462 = vector.extract_strided_slice %461 {offsets = [0, 0], sizes = [2, 32], strides = [1, 1]} : vector<2x64xf32> to vector<2x32xf32>
    %463 = vector.extract_strided_slice %461 {offsets = [0, 32], sizes = [2, 32], strides = [1, 1]} : vector<2x64xf32> to vector<2x32xf32>
    %464 = vector.extract_strided_slice %453 {offsets = [0, 64], sizes = [2, 32], strides = [1, 1]} : vector<2x128xf32> to vector<2x32xf32>
    %465 = vector.extract_strided_slice %452 {offsets = [0, 64], sizes = [2, 32], strides = [1, 1]} : vector<2x128xf32> to vector<2x32xf32>
    %466 = arith.mulf %462, %465 : vector<2x32xf32>
    %467 = arith.addf %464, %466 : vector<2x32xf32>
    %468 = math.tanh %467 : vector<2x32xf32>
    %cst_89 = arith.constant 1.000000e+00 : f32
    %469 = vector.broadcast %cst_89 : f32 to vector<2x32xf32>
    %470 = arith.subf %469, %463 : vector<2x32xf32>
    %471 = arith.mulf %470, %468 : vector<2x32xf32>
    %472 = arith.mulf %463, %450 : vector<2x32xf32>
    %473 = arith.addf %471, %472 : vector<2x32xf32>
    %cst_90 = arith.constant dense<0.000000e+00> : vector<2x128xf32>
    %474 = tpu.matmul %473, %354, %cst_90 {dimension_numbers = #tpu.dot_dimension_numbers<[1], [0], [0], [1], [0, 0, 1, 1], [], []>} : vector<2x32xf32>, vector<32x128xf32>, vector<2x128xf32> -> vector<2x128xf32>
    %475 = arith.addf %474, %357 : vector<2x128xf32>
    %476 = vector.extract_strided_slice %353 {offsets = [10, 0], sizes = [2, 128], strides = [1, 1]} : vector<12x128xf32> to vector<2x128xf32>
    %477 = vector.extract_strided_slice %476 {offsets = [0, 0], sizes = [2, 64], strides = [1, 1]} : vector<2x128xf32> to vector<2x64xf32>
    %478 = vector.extract_strided_slice %475 {offsets = [0, 0], sizes = [2, 64], strides = [1, 1]} : vector<2x128xf32> to vector<2x64xf32>
    %479 = arith.addf %477, %478 : vector<2x64xf32>
    %480 = arith.negf %479 : vector<2x64xf32>
    %481 = math.exp %480 : vector<2x64xf32>
    %cst_91 = arith.constant 1.000000e+00 : f32
    %482 = vector.broadcast %cst_91 : f32 to vector<2x64xf32>
    %483 = arith.addf %482, %481 : vector<2x64xf32>
    %484 = arith.divf %482, %483 : vector<2x64xf32>
    %485 = vector.extract_strided_slice %484 {offsets = [0, 0], sizes = [2, 32], strides = [1, 1]} : vector<2x64xf32> to vector<2x32xf32>
    %486 = vector.extract_strided_slice %484 {offsets = [0, 32], sizes = [2, 32], strides = [1, 1]} : vector<2x64xf32> to vector<2x32xf32>
    %487 = vector.extract_strided_slice %476 {offsets = [0, 64], sizes = [2, 32], strides = [1, 1]} : vector<2x128xf32> to vector<2x32xf32>
    %488 = vector.extract_strided_slice %475 {offsets = [0, 64], sizes = [2, 32], strides = [1, 1]} : vector<2x128xf32> to vector<2x32xf32>
    %489 = arith.mulf %485, %488 : vector<2x32xf32>
    %490 = arith.addf %487, %489 : vector<2x32xf32>
    %491 = math.tanh %490 : vector<2x32xf32>
    %cst_92 = arith.constant 1.000000e+00 : f32
    %492 = vector.broadcast %cst_92 : f32 to vector<2x32xf32>
    %493 = arith.subf %492, %486 : vector<2x32xf32>
    %494 = arith.mulf %493, %491 : vector<2x32xf32>
    %495 = arith.mulf %486, %473 : vector<2x32xf32>
    %496 = arith.addf %494, %495 : vector<2x32xf32>
    %497 = tpu.concatenate %381, %404, %427, %450, %473, %496 in 0 : vector<2x32xf32>, vector<2x32xf32>, vector<2x32xf32>, vector<2x32xf32>, vector<2x32xf32>, vector<2x32xf32> -> vector<12x32xf32>
    %c0_93 = arith.constant 0 : index
    %c0_94 = arith.constant 0 : index
    %498 = vector.load %arg14[%c0_93, %c0_94] : memref<32x128xf32, #tpu.memory_space<vmem>>, vector<32x128xf32>
    %cst_95 = arith.constant dense<0.000000e+00> : vector<12x128xf32>
    %499 = tpu.matmul %497, %498, %cst_95 {dimension_numbers = #tpu.dot_dimension_numbers<[1], [0], [0], [1], [0, 0, 1, 1], [], []>} : vector<12x32xf32>, vector<32x128xf32>, vector<12x128xf32> -> vector<12x128xf32>
    %c0_96 = arith.constant 0 : index
    %c0_97 = arith.constant 0 : index
    %500 = vector.load %arg15[%c0_96, %c0_97] : memref<1x128xf32, #tpu.memory_space<vmem>>, vector<1x128xf32>
    %501 = vector.broadcast %500 : vector<1x128xf32> to vector<12x128xf32>
    %502 = arith.addf %499, %501 : vector<12x128xf32>
    %cst_98 = arith.constant dense<0xFF800000> : vector<12xf32>
    %503 = vector.multi_reduction <maximumf>, %502, %cst_98 [1] : vector<12x128xf32> to vector<12xf32>
    %504 = vector.shape_cast %503 : vector<12xf32> to vector<12x1xf32>
    %505 = vector.broadcast %504 : vector<12x1xf32> to vector<12x128xf32>
    %506 = arith.subf %502, %505 : vector<12x128xf32>
    %507 = math.exp %506 : vector<12x128xf32>
    %cst_99 = arith.constant dense<0.000000e+00> : vector<12xf32>
    %508 = vector.multi_reduction <add>, %507, %cst_99 [1] : vector<12x128xf32> to vector<12xf32>
    %509 = vector.shape_cast %508 : vector<12xf32> to vector<12x1xf32>
    %510 = math.log %509 : vector<12x1xf32>
    %511 = arith.addf %510, %504 : vector<12x1xf32>
    %512 = vector.broadcast %511 : vector<12x1xf32> to vector<12x128xf32>
    %513 = arith.subf %502, %512 : vector<12x128xf32>
    %c0_100 = arith.constant 0 : index
    %c0_101 = arith.constant 0 : index
    %514 = vector.load %arg16[%c0_100, %c0_101] : memref<12x128xf32, #tpu.memory_space<vmem>>, vector<12x128xf32>
    tpu.vector_store %arg16[%c0_100, %c0_101], %513 {strides = array<i32>} : memref<12x128xf32, #tpu.memory_space<vmem>>, vector<12x128xf32>,
    return
  }
}

</mosaic_0001>

<llo_original>
// kernel: rnn_lm_forward.1
$region0: #{rnn_lm_forward.1}
  #allocation0 [shape = 'u32[]', space=smem, size = 0x4, offset = 0x4, fixed_abs, tag = 'smem constant byte address 0x4 - core index']
  #allocation1 [shape = 'u32[72,128]{1,0:T(1,128)}', space=vmem, size = 0x9000, scoped, tag = 'internal scratch']
  %s0 = inlined_call_operand.vmem [shape: f32[16,32], index: 0, kind: input, shape index: {}]
  %s1 = inlined_call_operand.vmem [shape: f32[32,128], index: 1, kind: input, shape index: {}]
  %s2 = inlined_call_operand.vmem [shape: f32[1,128], index: 2, kind: input, shape index: {}]
  %s3 = inlined_call_operand.vmem [shape: f32[32,128], index: 3, kind: input, shape index: {}]
  %s4 = inlined_call_operand.vmem [shape: f32[1,128], index: 4, kind: input, shape index: {}]
  %s5 = inlined_call_operand.vmem [shape: f32[32,128], index: 5, kind: input, shape index: {}]
  %s6 = inlined_call_operand.vmem [shape: f32[1,128], index: 6, kind: input, shape index: {}]
  %s7 = inlined_call_operand.vmem [shape: f32[32,128], index: 7, kind: input, shape index: {}]
  %s8 = inlined_call_operand.vmem [shape: f32[1,128], index: 8, kind: input, shape index: {}]
  %s9 = inlined_call_operand.vmem [shape: f32[32,128], index: 9, kind: input, shape index: {}]
  %s10 = inlined_call_operand.vmem [shape: f32[32,128], index: 10, kind: input, shape index: {}]
  %s11 = inlined_call_operand.vmem [shape: f32[1,128], index: 11, kind: input, shape index: {}]
  %s12 = inlined_call_operand.vmem [shape: f32[32,128], index: 12, kind: input, shape index: {}]
  %s13 = inlined_call_operand.vmem [shape: f32[1,128], index: 13, kind: input, shape index: {}]
  %s14 = inlined_call_operand.hbm [shape: f32[32,128], index: 14, kind: input, shape index: {}]
  %s15 = inlined_call_operand.vmem [shape: f32[1,128], index: 15, kind: input, shape index: {}]
  %s16 = inlined_call_operand.hbm [shape: f32[12,128], index: 16, kind: output, shape index: {}]
  %s17 = sld [smem:[#allocation0]]
  $region78: #{rnn_lm_forward.1} parent=0
    _
  %s19 = ssub.s32 1, %s17
  %s20 = scalar_select 0, %s19, %s17
  $region1: #{rnn_lm_forward.1} parent=0
    #allocation2 [shape = 'u8[16384]{0}', space=vmem, size = 0x4000, scoped, tag = 'input window, operand 14, single buffered']
    #allocation3 [shape = 's32[1]{0}', space=sflag, size = 0x4, scoped, tag = 'scoped memory for rnn_lm_forward.1']
    #allocation4 [shape = 's32[1]{0}', space=sflag, size = 0x4, scoped, tag = 'scoped memory for rnn_lm_forward.1']
    #allocation5 [shape = 'u8[8192]{0}', space=vmem, size = 0x2000, scoped, tag = 'output window, operand 0, single buffered']
    %21 = vsyncpa [#allocation3], 0
    %22 = vsyncpa [#allocation4], 0
    // Predicated region
    $region2: #{rnn_lm_forward.1} parent=1 // pred_check
      _
    $region3: #{rnn_lm_forward.1} parent=1 // pred_check_branch
      %24 = sbr.rel (0) target = $region5
    $region4: #{rnn_lm_forward.1} parent=1 // pred_region
      _
    $region5: #{rnn_lm_forward.1} parent=1 // pred_fallthru
      _
    // Predicated region
    $region6: #{rnn_lm_forward.1} parent=1 // pred_check
      _
    $region7: #{rnn_lm_forward.1} parent=1 // pred_check_branch
      %26 = sbr.rel (0) target = $region9
    $region8: #{rnn_lm_forward.1} parent=1 // pred_region
      _
    $region9: #{rnn_lm_forward.1} parent=1 // pred_fallthru
      _
    // Predicated region
    $region10: #{rnn_lm_forward.1} parent=1 // pred_check
      _
    $region11: #{rnn_lm_forward.1} parent=1 // pred_check_branch
      %28 = sbr.rel (0) target = $region13
    $region12: #{rnn_lm_forward.1} parent=1 // pred_region
      _
    $region13: #{rnn_lm_forward.1} parent=1 // pred_fallthru
      _
    // Predicated region
    $region14: #{rnn_lm_forward.1} parent=1 // pred_check
      _
    $region15: #{rnn_lm_forward.1} parent=1 // pred_check_branch
      %30 = sbr.rel (0) target = $region17
    $region16: #{rnn_lm_forward.1} parent=1 // pred_region
      _
    $region17: #{rnn_lm_forward.1} parent=1 // pred_fallthru
      _
    // Predicated region
    $region18: #{rnn_lm_forward.1} parent=1 // pred_check
      _
    $region19: #{rnn_lm_forward.1} parent=1 // pred_check_branch
      %32 = sbr.rel (0) target = $region21
    $region20: #{rnn_lm_forward.1} parent=1 // pred_region
      _
    $region21: #{rnn_lm_forward.1} parent=1 // pred_fallthru
      _
    // Predicated region
    $region22: #{rnn_lm_forward.1} parent=1 // pred_check
      _
    $region23: #{rnn_lm_forward.1} parent=1 // pred_check_branch
      %34 = sbr.rel (0) target = $region25
    $region24: #{rnn_lm_forward.1} parent=1 // pred_region
      _
    $region25: #{rnn_lm_forward.1} parent=1 // pred_fallthru
      _
    // Predicated region
    $region26: #{rnn_lm_forward.1} parent=1 // pred_check
      _
    $region27: #{rnn_lm_forward.1} parent=1 // pred_check_branch
      %36 = sbr.rel (0) target = $region29
    $region28: #{rnn_lm_forward.1} parent=1 // pred_region
      _
    $region29: #{rnn_lm_forward.1} parent=1 // pred_fallthru
      _
    // Predicated region
    $region30: #{rnn_lm_forward.1} parent=1 // pred_check
      _
    $region31: #{rnn_lm_forward.1} parent=1 // pred_check_branch
      %38 = sbr.rel (0) target = $region33
    $region32: #{rnn_lm_forward.1} parent=1 // pred_region
      _
    $region33: #{rnn_lm_forward.1} parent=1 // pred_fallthru
      _
    // Predicated region
    $region34: #{rnn_lm_forward.1} parent=1 // pred_check
      _
    $region35: #{rnn_lm_forward.1} parent=1 // pred_check_branch
      %40 = sbr.rel (0) target = $region37
    $region36: #{rnn_lm_forward.1} parent=1 // pred_region
      _
    $region37: #{rnn_lm_forward.1} parent=1 // pred_fallthru
      _
    // Predicated region
    $region38: #{rnn_lm_forward.1} parent=1 // pred_check
      _
    $region39: #{rnn_lm_forward.1} parent=1 // pred_check_branch
      %42 = sbr.rel (0) target = $region41
    $region40: #{rnn_lm_forward.1} parent=1 // pred_region
      _
    $region41: #{rnn_lm_forward.1} parent=1 // pred_fallthru
      _
    // Predicated region
    $region42: #{rnn_lm_forward.1} parent=1 // pred_check
      _
    $region43: #{rnn_lm_forward.1} parent=1 // pred_check_branch
      %44 = sbr.rel (0) target = $region45
    $region44: #{rnn_lm_forward.1} parent=1 // pred_region
      _
    $region45: #{rnn_lm_forward.1} parent=1 // pred_fallthru
      _
    // Predicated region
    $region46: #{rnn_lm_forward.1} parent=1 // pred_check
      _
    $region47: #{rnn_lm_forward.1} parent=1 // pred_check_branch
      %46 = sbr.rel (0) target = $region49
    $region48: #{rnn_lm_forward.1} parent=1 // pred_region
      _
    $region49: #{rnn_lm_forward.1} parent=1 // pred_fallthru
      _
    // Predicated region
    $region50: #{rnn_lm_forward.1} parent=1 // pred_check
      _
    $region51: #{rnn_lm_forward.1} parent=1 // pred_check_branch
      %48 = sbr.rel (0) target = $region53
    $region52: #{rnn_lm_forward.1} parent=1 // pred_region
      _
    $region53: #{rnn_lm_forward.1} parent=1 // pred_fallthru
      _
    // Predicated region
    $region54: #{rnn_lm_forward.1} parent=1 // pred_check
      _
    $region55: #{rnn_lm_forward.1} parent=1 // pred_check_branch
      %50 = sbr.rel (0) target = $region57
    $region56: #{rnn_lm_forward.1} parent=1 // pred_region
      _
    $region57: #{rnn_lm_forward.1} parent=1 // pred_fallthru
      _
    // Predicated region
    $region58: #{rnn_lm_forward.1} parent=1 // pred_check
      _
    $region59: #{rnn_lm_forward.1} parent=1 // pred_check_branch
      %52 = sbr.rel (0) target = $region61
    $region60: #{rnn_lm_forward.1} parent=1 // pred_region
      %54 = vsyncadd [#allocation3], 0
      %s55 = sshll.u32 %s14, 4
      %s56 = int_to_ptr.hbm [resolvable:$true] %s55
      %s57 = sshll.u32 [#allocation2], 4
      %s58 = int_to_ptr.vmem [resolvable:$true] %s57
      %63 = dma.hbm_to_vmem [thread:$0]  %s56, 512, %s58, [#allocation3], 128, 128, 8
    $region61: #{rnn_lm_forward.1} parent=1 // pred_fallthru
      _
    // Predicated region
    $region62: #{rnn_lm_forward.1} parent=1 // pred_check
      _
    $region63: #{rnn_lm_forward.1} parent=1 // pred_check_branch
      %65 = sbr.rel (0) target = $region65
    $region64: #{rnn_lm_forward.1} parent=1 // pred_region
      _
    $region65: #{rnn_lm_forward.1} parent=1 // pred_fallthru
      _
    // Predicated region
    $region66: #{rnn_lm_forward.1} parent=1 // pred_check
      _
    $region67: #{rnn_lm_forward.1} parent=1 // pred_check_branch
      %67 = sbr.rel (0) target = $region69
    $region68: #{rnn_lm_forward.1} parent=1 // pred_region
      %69 = dma.done [#allocation3], 512
    $region69: #{rnn_lm_forward.1} parent=1 // pred_fallthru
      _
    %v70 = vld [vmem:[%s0] sm:$0xff]
    %v71 = vld [vmem:[%s0 + $0x8] sm:$0xff]
    %v72 = vld [vmem:[%s1] sm:$0xff]
    %v73 = vld [vmem:[%s1 + $0x8] sm:$0xff]
    %v74 = vld [vmem:[%s1 + $0x10] sm:$0xff]
    %v75 = vld [vmem:[%s1 + $0x18] sm:$0xff]
    %v76 = vld [vmem:[%s2] sm:$0x1]
    %v78 = vperm.slane %v76, 0
    %vm80 = vcmask 261120
    %v82 = vsel %vm80, %v70, 0
    %v85 = vsel %vm80, %v71, 0
    %87 = vmatpush.msra.mxu0 0.0
    %88 = vmatpush.msra.mxu0 0.0
    %89 = vmatpush.msra.mxu0 0.0
    %90 = vmatpush.msra.mxu0 0.0
    %91 = vmatpush.msra.mxu0 0.0
    %92 = vmatpush.msra.mxu0 0.0
    %93 = vmatpush.msra.mxu0 0.0
    %94 = vmatpush.msra.mxu0 0.0
    %95 = vmatpush.msra.mxu0 0.0
    %96 = vmatpush.msra.mxu0 0.0
    %97 = vmatpush.msra.mxu0 0.0
    %98 = vmatpush.msra.mxu0 0.0
    %99 = vmatpush.msra.mxu0 %v75
    %100 = vmatpush.msra.mxu0 %v74
    %101 = vmatpush.msra.mxu0 %v73
    %102 = vmatpush.msra.mxu0 %v72
    %103 = vmatmul.f32.gmra.mxu0 %v82
    %v104 = vpop.f32.mrf.mxu0
    %v105 = vadd.f32 %v78, %v104
    %106 = vmatmul.f32.gmra.mxu0 %v85
    %v107 = vpop.f32.mrf.mxu0
    %v108 = vadd.f32 %v78, %v107
    %109 = vdwg.mxu0
    %v110 = vld [vmem:[%s5] sm:$0xff]
    %v111 = vld [vmem:[%s5 + $0x8] sm:$0xff]
    %v112 = vld [vmem:[%s5 + $0x10] sm:$0xff]
    %v113 = vld [vmem:[%s5 + $0x18] sm:$0xff]
    %v114 = vld [vmem:[%s6] sm:$0x1]
    %v116 = vperm.slane %v114, 0
    %118 = vmatpush.msra.mxu0 0.0
    %119 = vmatpush.msra.mxu0 0.0
    %120 = vmatpush.msra.mxu0 0.0
    %121 = vmatpush.msra.mxu0 0.0
    %122 = vmatpush.msra.mxu0 0.0
    %123 = vmatpush.msra.mxu0 0.0
    %124 = vmatpush.msra.mxu0 0.0
    %125 = vmatpush.msra.mxu0 0.0
    %126 = vmatpush.msra.mxu0 0.0
    %127 = vmatpush.msra.mxu0 0.0
    %128 = vmatpush.msra.mxu0 0.0
    %129 = vmatpush.msra.mxu0 0.0
    %130 = vmatpush.msra.mxu0 %v113
    %131 = vmatpush.msra.mxu0 %v112
    %132 = vmatpush.msra.mxu0 %v111
    %133 = vmatpush.msra.mxu0 %v110
    %134 = vmatmul.f32.gmra.mxu0 %v82
    %v135 = vpop.f32.mrf.mxu0
    %v136 = vadd.f32 %v116, %v135
    %137 = vmatmul.f32.gmra.mxu0 %v85
    %v138 = vpop.f32.mrf.mxu0
    %v139 = vadd.f32 %v116, %v138
    %140 = vdwg.mxu0
    %v141 = vld [vmem:[%s3] sm:$0xff]
    %v142 = vld [vmem:[%s3 + $0x8] sm:$0xff]
    %v143 = vld [vmem:[%s3 + $0x10] sm:$0xff]
    %v144 = vld [vmem:[%s3 + $0x18] sm:$0xff]
    %v145 = vld [vmem:[%s4] sm:$0x1]
    %v147 = vperm.slane %v145, 0
    %v150 = vsel %vm80, 0.0, 0
    %152 = vmatpush.msra.mxu0 0.0
    %153 = vmatpush.msra.mxu0 0.0
    %154 = vmatpush.msra.mxu0 0.0
    %155 = vmatpush.msra.mxu0 0.0
    %156 = vmatpush.msra.mxu0 0.0
    %157 = vmatpush.msra.mxu0 0.0
    %158 = vmatpush.msra.mxu0 0.0
    %159 = vmatpush.msra.mxu0 0.0
    %160 = vmatpush.msra.mxu0 0.0
    %161 = vmatpush.msra.mxu0 0.0
    %162 = vmatpush.msra.mxu0 0.0
    %163 = vmatpush.msra.mxu0 0.0
    %164 = vmatpush.msra.mxu0 %v144
    %165 = vmatpush.msra.mxu0 %v143
    %166 = vmatpush.msra.mxu0 %v142
    %167 = vmatpush.msra.mxu0 %v141
    %168 = vmatmul.f32.gmra.mxu0 %v150
    %v169 = vpop.f32.mrf.mxu0
    %v170 = vadd.f32 %v147, %v169
    %171 = vdwg.mxu0
    %v172 = vadd.f32 %v105, %v170
    %v173 = vxor.u32 %v172, 2147483648
    %v174 = vmul.f32 %v173, 1.442695
    %v175 = vpow.pop %v174
    %v176 = vadd.f32 %v175, 1.0
    %v177 = vrcp.pop %v176
    %v178 = vmul.f32 %v176, %v177
    %v179 = vsub.f32 1.0, %v178
    %v180 = vmul.f32 %v177, %v179
    %v181 = vadd.f32 %v177, %v180
    %vm182 = vweird.f32 %v176
    %vm183 = vweird.f32 %v177
    %vm184 = vmor %vm182, %vm183
    %v185 = vsel %vm184, %v177, %v181
    %v186 = vand.u32 2147483647, %v176
    %vm187 = vcmp.eq.f32.partialorder %v186, 8.507059e+37
    %v188 = vand.u32 %v176, 2147483648
    %v189 = vor.u32 1.1754944e-38, %v188
    %v190 = vsel %vm187, %v189, %v185
    %v191 = vmul.f32 1.0, %v190
    %193 = vrot.lane.b32.xlu0 %v170, 64
    %v194 = vpop.permute.xlu0 %193
    %v196 = vmul.f32 %v191, %v194
    %198 = vrot.lane.b32.xlu0 %v196, 64
    %v199 = vpop.permute.xlu0 %198
    %v201 = vadd.f32 %v105, %v199
    %v202 = vtanh.pop %v201
    %v203 = vsub.f32 1.0, %v191
    %205 = vrot.lane.b32.xlu0 %v202, 96
    %v206 = vpop.permute.xlu0 %205
    %v208 = vmul.f32 %v203, %v206
    %v209 = vmul.f32 %v191, 0.0
    %v210 = vadd.f32 %v208, %v209
    %212 = vrot.lane.b32.xlu0 %v210, 96
    %v213 = vpop.permute.xlu0 %212
    %v214 = vsel %vm80, %v213, 0
    %216 = vmatpush.msra.mxu0 0.0
    %217 = vmatpush.msra.mxu0 0.0
    %218 = vmatpush.msra.mxu0 0.0
    %219 = vmatpush.msra.mxu0 0.0
    %220 = vmatpush.msra.mxu0 0.0
    %221 = vmatpush.msra.mxu0 0.0
    %222 = vmatpush.msra.mxu0 0.0
    %223 = vmatpush.msra.mxu0 0.0
    %224 = vmatpush.msra.mxu0 0.0
    %225 = vmatpush.msra.mxu0 0.0
    %226 = vmatpush.msra.mxu0 0.0
    %227 = vmatpush.msra.mxu0 0.0
    %228 = vmatpush.msra.mxu0 %v144
    %229 = vmatpush.msra.mxu0 %v143
    %230 = vmatpush.msra.mxu0 %v142
    %231 = vmatpush.msra.mxu0 %v141
    %232 = vmatmul.f32.gmra.mxu0 %v214
    %v233 = vpop.f32.mrf.mxu0
    %v234 = vadd.f32 %v147, %v233
    %235 = vdwg.mxu0
    %v237 = vrot.slane %v234, 6
    %v239 = vadd.f32 %v105, %v237
    %v240 = vxor.u32 %v239, 2147483648
    %v241 = vmul.f32 %v240, 1.442695
    %v242 = vpow.pop %v241
    %v243 = vadd.f32 %v242, 1.0
    %v244 = vrcp.pop %v243
    %v245 = vmul.f32 %v243, %v244
    %v246 = vsub.f32 1.0, %v245
    %v247 = vmul.f32 %v244, %v246
    %v248 = vadd.f32 %v244, %v247
    %vm249 = vweird.f32 %v243
    %vm250 = vweird.f32 %v244
    %vm251 = vmor %vm249, %vm250
    %v252 = vsel %vm251, %v244, %v248
    %v253 = vand.u32 2147483647, %v243
    %vm254 = vcmp.eq.f32.partialorder %v253, 8.507059e+37
    %v255 = vand.u32 %v243, 2147483648
    %v256 = vor.u32 1.1754944e-38, %v255
    %v257 = vsel %vm254, %v256, %v252
    %v258 = vmul.f32 1.0, %v257
    %259 = vrot.lane.b32.xlu0 %v237, 64
    %v260 = vpop.permute.xlu0 %259
    %v262 = vmul.f32 %v258, %v260
    %264 = vrot.lane.b32.xlu0 %v262, 64
    %v265 = vpop.permute.xlu0 %264
    %v267 = vadd.f32 %v105, %v265
    %v268 = vtanh.pop %v267
    %v269 = vsub.f32 1.0, %v258
    %271 = vrot.lane.b32.xlu0 %v268, 96
    %v272 = vpop.permute.xlu0 %271
    %v274 = vmul.f32 %v269, %v272
    %v275 = vrot.slane %v210, 6
    %v277 = vmul.f32 %v258, %v275
    %v278 = vadd.f32 %v274, %v277
    %v280 = vrot.slane %v278, 2
    %281 = vrot.lane.b32.xlu0 %v280, 96
    %v282 = vpop.permute.xlu0 %281
    %v283 = vsel %vm80, %v282, 0
    %285 = vmatpush.msra.mxu0 0.0
    %286 = vmatpush.msra.mxu0 0.0
    %287 = vmatpush.msra.mxu0 0.0
    %288 = vmatpush.msra.mxu0 0.0
    %289 = vmatpush.msra.mxu0 0.0
    %290 = vmatpush.msra.mxu0 0.0
    %291 = vmatpush.msra.mxu0 0.0
    %292 = vmatpush.msra.mxu0 0.0
    %293 = vmatpush.msra.mxu0 0.0
    %294 = vmatpush.msra.mxu0 0.0
    %295 = vmatpush.msra.mxu0 0.0
    %296 = vmatpush.msra.mxu0 0.0
    %297 = vmatpush.msra.mxu0 %v144
    %298 = vmatpush.msra.mxu0 %v143
    %299 = vmatpush.msra.mxu0 %v142
    %300 = vmatpush.msra.mxu0 %v141
    %301 = vmatmul.f32.gmra.mxu0 %v283
    %v302 = vpop.f32.mrf.mxu0
    %v303 = vadd.f32 %v147, %v302
    %304 = vdwg.mxu0
    %v306 = vrot.slane %v303, 4
    %v308 = vadd.f32 %v105, %v306
    %v309 = vxor.u32 %v308, 2147483648
    %v310 = vmul.f32 %v309, 1.442695
    %v311 = vpow.pop %v310
    %v312 = vadd.f32 %v311, 1.0
    %v313 = vrcp.pop %v312
    %v314 = vmul.f32 %v312, %v313
    %v315 = vsub.f32 1.0, %v314
    %v316 = vmul.f32 %v313, %v315
    %v317 = vadd.f32 %v313, %v316
    %vm318 = vweird.f32 %v312
    %vm319 = vweird.f32 %v313
    %vm320 = vmor %vm318, %vm319
    %v321 = vsel %vm320, %v313, %v317
    %v322 = vand.u32 2147483647, %v312
    %vm323 = vcmp.eq.f32.partialorder %v322, 8.507059e+37
    %v324 = vand.u32 %v312, 2147483648
    %v325 = vor.u32 1.1754944e-38, %v324
    %v326 = vsel %vm323, %v325, %v321
    %v327 = vmul.f32 1.0, %v326
    %328 = vrot.lane.b32.xlu0 %v306, 64
    %v329 = vpop.permute.xlu0 %328
    %v331 = vmul.f32 %v327, %v329
    %333 = vrot.lane.b32.xlu0 %v331, 64
    %v334 = vpop.permute.xlu0 %333
    %v336 = vadd.f32 %v105, %v334
    %v337 = vtanh.pop %v336
    %v338 = vsub.f32 1.0, %v327
    %340 = vrot.lane.b32.xlu0 %v337, 96
    %v341 = vpop.permute.xlu0 %340
    %v343 = vmul.f32 %v338, %v341
    %v344 = vrot.slane %v278, 6
    %v346 = vmul.f32 %v327, %v344
    %v347 = vadd.f32 %v343, %v346
    %v349 = vrot.slane %v347, 4
    %350 = vrot.lane.b32.xlu0 %v349, 96
    %v351 = vpop.permute.xlu0 %350
    %v352 = vsel %vm80, %v351, 0
    %354 = vmatpush.msra.mxu0 0.0
    %355 = vmatpush.msra.mxu0 0.0
    %356 = vmatpush.msra.mxu0 0.0
    %357 = vmatpush.msra.mxu0 0.0
    %358 = vmatpush.msra.mxu0 0.0
    %359 = vmatpush.msra.mxu0 0.0
    %360 = vmatpush.msra.mxu0 0.0
    %361 = vmatpush.msra.mxu0 0.0
    %362 = vmatpush.msra.mxu0 0.0
    %363 = vmatpush.msra.mxu0 0.0
    %364 = vmatpush.msra.mxu0 0.0
    %365 = vmatpush.msra.mxu0 0.0
    %366 = vmatpush.msra.mxu0 %v144
    %367 = vmatpush.msra.mxu0 %v143
    %368 = vmatpush.msra.mxu0 %v142
    %369 = vmatpush.msra.mxu0 %v141
    %370 = vmatmul.f32.gmra.mxu0 %v352
    %v371 = vpop.f32.mrf.mxu0
    %v372 = vadd.f32 %v147, %v371
    %373 = vdwg.mxu0
    %v375 = vrot.slane %v372, 2
    %v377 = vadd.f32 %v105, %v375
    %v378 = vxor.u32 %v377, 2147483648
    %v379 = vmul.f32 %v378, 1.442695
    %v380 = vpow.pop %v379
    %v381 = vadd.f32 %v380, 1.0
    %v382 = vrcp.pop %v381
    %v383 = vmul.f32 %v381, %v382
    %v384 = vsub.f32 1.0, %v383
    %v385 = vmul.f32 %v382, %v384
    %v386 = vadd.f32 %v382, %v385
    %vm387 = vweird.f32 %v381
    %vm388 = vweird.f32 %v382
    %vm389 = vmor %vm387, %vm388
    %v390 = vsel %vm389, %v382, %v386
    %v391 = vand.u32 2147483647, %v381
    %vm392 = vcmp.eq.f32.partialorder %v391, 8.507059e+37
    %v393 = vand.u32 %v381, 2147483648
    %v394 = vor.u32 1.1754944e-38, %v393
    %v395 = vsel %vm392, %v394, %v390
    %v396 = vmul.f32 1.0, %v395
    %397 = vrot.lane.b32.xlu0 %v375, 64
    %v398 = vpop.permute.xlu0 %397
    %v400 = vmul.f32 %v396, %v398
    %402 = vrot.lane.b32.xlu0 %v400, 64
    %v403 = vpop.permute.xlu0 %402
    %v405 = vadd.f32 %v105, %v403
    %v406 = vtanh.pop %v405
    %v407 = vsub.f32 1.0, %v396
    %409 = vrot.lane.b32.xlu0 %v406, 96
    %v410 = vpop.permute.xlu0 %409
    %v412 = vmul.f32 %v407, %v410
    %v413 = vrot.slane %v347, 6
    %v415 = vmul.f32 %v396, %v413
    %v416 = vadd.f32 %v412, %v415
    %v418 = vrot.slane %v416, 6
    %419 = vrot.lane.b32.xlu0 %v418, 96
    %v420 = vpop.permute.xlu0 %419
    %v421 = vsel %vm80, %v420, 0
    %423 = vmatpush.msra.mxu0 0.0
    %424 = vmatpush.msra.mxu0 0.0
    %425 = vmatpush.msra.mxu0 0.0
    %426 = vmatpush.msra.mxu0 0.0
    %427 = vmatpush.msra.mxu0 0.0
    %428 = vmatpush.msra.mxu0 0.0
    %429 = vmatpush.msra.mxu0 0.0
    %430 = vmatpush.msra.mxu0 0.0
    %431 = vmatpush.msra.mxu0 0.0
    %432 = vmatpush.msra.mxu0 0.0
    %433 = vmatpush.msra.mxu0 0.0
    %434 = vmatpush.msra.mxu0 0.0
    %435 = vmatpush.msra.mxu0 %v144
    %436 = vmatpush.msra.mxu0 %v143
    %437 = vmatpush.msra.mxu0 %v142
    %438 = vmatpush.msra.mxu0 %v141
    %439 = vmatmul.f32.gmra.mxu0 %v421
    %v440 = vpop.f32.mrf.mxu0
    %v441 = vadd.f32 %v147, %v440
    %442 = vdwg.mxu0
    %v443 = vadd.f32 %v108, %v441
    %v444 = vxor.u32 %v443, 2147483648
    %v445 = vmul.f32 %v444, 1.442695
    %v446 = vpow.pop %v445
    %v447 = vadd.f32 %v446, 1.0
    %v448 = vrcp.pop %v447
    %v449 = vmul.f32 %v447, %v448
    %v450 = vsub.f32 1.0, %v449
    %v451 = vmul.f32 %v448, %v450
    %v452 = vadd.f32 %v448, %v451
    %vm453 = vweird.f32 %v447
    %vm454 = vweird.f32 %v448
    %vm455 = vmor %vm453, %vm454
    %v456 = vsel %vm455, %v448, %v452
    %v457 = vand.u32 2147483647, %v447
    %vm458 = vcmp.eq.f32.partialorder %v457, 8.507059e+37
    %v459 = vand.u32 %v447, 2147483648
    %v460 = vor.u32 1.1754944e-38, %v459
    %v461 = vsel %vm458, %v460, %v456
    %v462 = vmul.f32 1.0, %v461
    %464 = vrot.lane.b32.xlu0 %v441, 64
    %v465 = vpop.permute.xlu0 %464
    %v467 = vmul.f32 %v462, %v465
    %469 = vrot.lane.b32.xlu0 %v467, 64
    %v470 = vpop.permute.xlu0 %469
    %v472 = vadd.f32 %v108, %v470
    %v473 = vtanh.pop %v472
    %v474 = vsub.f32 1.0, %v462
    %476 = vrot.lane.b32.xlu0 %v473, 96
    %v477 = vpop.permute.xlu0 %476
    %v479 = vmul.f32 %v474, %v477
    %v481 = vmul.f32 %v462, %v418
    %v482 = vadd.f32 %v479, %v481
    %484 = vrot.lane.b32.xlu0 %v482, 96
    %v485 = vpop.permute.xlu0 %484
    %v486 = vsel %vm80, %v485, 0
    %488 = vmatpush.msra.mxu0 0.0
    %489 = vmatpush.msra.mxu0 0.0
    %490 = vmatpush.msra.mxu0 0.0
    %491 = vmatpush.msra.mxu0 0.0
    %492 = vmatpush.msra.mxu0 0.0
    %493 = vmatpush.msra.mxu0 0.0
    %494 = vmatpush.msra.mxu0 0.0
    %495 = vmatpush.msra.mxu0 0.0
    %496 = vmatpush.msra.mxu0 0.0
    %497 = vmatpush.msra.mxu0 0.0
    %498 = vmatpush.msra.mxu0 0.0
    %499 = vmatpush.msra.mxu0 0.0
    %500 = vmatpush.msra.mxu0 %v144
    %501 = vmatpush.msra.mxu0 %v143
    %502 = vmatpush.msra.mxu0 %v142
    %503 = vmatpush.msra.mxu0 %v141
    %504 = vmatmul.f32.gmra.mxu0 %v486
    %v505 = vpop.f32.mrf.mxu0
    %v506 = vadd.f32 %v147, %v505
    %507 = vdwg.mxu0
    %v509 = vrot.slane %v506, 6
    %v511 = vadd.f32 %v108, %v509
    %v512 = vxor.u32 %v511, 2147483648
    %v513 = vmul.f32 %v512, 1.442695
    %v514 = vpow.pop %v513
    %v515 = vadd.f32 %v514, 1.0
    %v516 = vrcp.pop %v515
    %v517 = vmul.f32 %v515, %v516
    %v518 = vsub.f32 1.0, %v517
    %v519 = vmul.f32 %v516, %v518
    %v520 = vadd.f32 %v516, %v519
    %vm521 = vweird.f32 %v515
    %vm522 = vweird.f32 %v516
    %vm523 = vmor %vm521, %vm522
    %v524 = vsel %vm523, %v516, %v520
    %v525 = vand.u32 2147483647, %v515
    %vm526 = vcmp.eq.f32.partialorder %v525, 8.507059e+37
    %v527 = vand.u32 %v515, 2147483648
    %v528 = vor.u32 1.1754944e-38, %v527
    %v529 = vsel %vm526, %v528, %v524
    %v530 = vmul.f32 1.0, %v529
    %531 = vrot.lane.b32.xlu0 %v509, 64
    %v532 = vpop.permute.xlu0 %531
    %v534 = vmul.f32 %v530, %v532
    %536 = vrot.lane.b32.xlu0 %v534, 64
    %v537 = vpop.permute.xlu0 %536
    %v539 = vadd.f32 %v108, %v537
    %v540 = vtanh.pop %v539
    %v541 = vsub.f32 1.0, %v530
    %543 = vrot.lane.b32.xlu0 %v540, 96
    %v544 = vpop.permute.xlu0 %543
    %v546 = vmul.f32 %v541, %v544
    %v547 = vrot.slane %v482, 6
    %v549 = vmul.f32 %v530, %v547
    %v550 = vadd.f32 %v546, %v549
    %vm551 = vcmask 1041408
    %v552 = vsel %vm551, %v210, %v278
    %vm553 = vcmask 1043456
    %v554 = vsel %vm553, %v552, %v347
    %vm555 = vcmask 1045504
    %v556 = vsel %vm555, %v554, %v416
    %v557 = vsel %vm551, %v482, %v550
    %v558 = vld [vmem:[%s9] sm:$0xff]
    %v559 = vld [vmem:[%s9 + $0x8] sm:$0xff]
    %v560 = vld [vmem:[%s9 + $0x10] sm:$0xff]
    %v561 = vld [vmem:[%s9 + $0x18] sm:$0xff]
    %v562 = vld [vmem:[%s7] sm:$0xff]
    %v563 = vld [vmem:[%s7 + $0x8] sm:$0xff]
    %v564 = vld [vmem:[%s7 + $0x10] sm:$0xff]
    %v565 = vld [vmem:[%s7 + $0x18] sm:$0xff]
    %v566 = vld [vmem:[%s8] sm:$0x1]
    %v568 = vperm.slane %v566, 0
    %570 = vmatpush.msra.mxu0 0.0
    %571 = vmatpush.msra.mxu0 0.0
    %572 = vmatpush.msra.mxu0 0.0
    %573 = vmatpush.msra.mxu0 0.0
    %574 = vmatpush.msra.mxu0 0.0
    %575 = vmatpush.msra.mxu0 0.0
    %576 = vmatpush.msra.mxu0 0.0
    %577 = vmatpush.msra.mxu0 0.0
    %578 = vmatpush.msra.mxu0 0.0
    %579 = vmatpush.msra.mxu0 0.0
    %580 = vmatpush.msra.mxu0 0.0
    %581 = vmatpush.msra.mxu0 0.0
    %582 = vmatpush.msra.mxu0 %v565
    %583 = vmatpush.msra.mxu0 %v564
    %584 = vmatpush.msra.mxu0 %v563
    %585 = vmatpush.msra.mxu0 %v562
    %586 = vmatmul.f32.gmra.mxu0 %v150
    %v587 = vpop.f32.mrf.mxu0
    %v588 = vadd.f32 %v568, %v587
    %589 = vdwg.mxu0
    %v591 = vrot.slane %v588, 2
    %v593 = vadd.f32 %v139, %v591
    %v594 = vxor.u32 %v593, 2147483648
    %v595 = vmul.f32 %v594, 1.442695
    %v596 = vpow.pop %v595
    %v597 = vadd.f32 %v596, 1.0
    %v598 = vrcp.pop %v597
    %v599 = vmul.f32 %v597, %v598
    %v600 = vsub.f32 1.0, %v599
    %v601 = vmul.f32 %v598, %v600
    %v602 = vadd.f32 %v598, %v601
    %vm603 = vweird.f32 %v597
    %vm604 = vweird.f32 %v598
    %vm605 = vmor %vm603, %vm604
    %v606 = vsel %vm605, %v598, %v602
    %v607 = vand.u32 2147483647, %v597
    %vm608 = vcmp.eq.f32.partialorder %v607, 8.507059e+37
    %v609 = vand.u32 %v597, 2147483648
    %v610 = vor.u32 1.1754944e-38, %v609
    %v611 = vsel %vm608, %v610, %v606
    %v612 = vmul.f32 1.0, %v611
    %613 = vrot.lane.b32.xlu0 %v591, 64
    %v614 = vpop.permute.xlu0 %613
    %v616 = vmul.f32 %v612, %v614
    %618 = vrot.lane.b32.xlu0 %v616, 64
    %v619 = vpop.permute.xlu0 %618
    %v621 = vadd.f32 %v139, %v619
    %v622 = vtanh.pop %v621
    %v623 = vsub.f32 1.0, %v612
    %625 = vrot.lane.b32.xlu0 %v622, 96
    %v626 = vpop.permute.xlu0 %625
    %v628 = vmul.f32 %v623, %v626
    %v629 = vmul.f32 %v612, 0.0
    %v630 = vadd.f32 %v628, %v629
    %v632 = vrot.slane %v630, 6
    %633 = vrot.lane.b32.xlu0 %v632, 96
    %v634 = vpop.permute.xlu0 %633
    %v635 = vsel %vm80, %v634, 0
    %637 = vmatpush.msra.mxu0 0.0
    %638 = vmatpush.msra.mxu0 0.0
    %639 = vmatpush.msra.mxu0 0.0
    %640 = vmatpush.msra.mxu0 0.0
    %641 = vmatpush.msra.mxu0 0.0
    %642 = vmatpush.msra.mxu0 0.0
    %643 = vmatpush.msra.mxu0 0.0
    %644 = vmatpush.msra.mxu0 0.0
    %645 = vmatpush.msra.mxu0 0.0
    %646 = vmatpush.msra.mxu0 0.0
    %647 = vmatpush.msra.mxu0 0.0
    %648 = vmatpush.msra.mxu0 0.0
    %649 = vmatpush.msra.mxu0 %v565
    %650 = vmatpush.msra.mxu0 %v564
    %651 = vmatpush.msra.mxu0 %v563
    %652 = vmatpush.msra.mxu0 %v562
    %653 = vmatmul.f32.gmra.mxu0 %v635
    %v654 = vpop.f32.mrf.mxu0
    %v655 = vadd.f32 %v568, %v654
    %656 = vdwg.mxu0
    %v658 = vrot.slane %v655, 4
    %v660 = vadd.f32 %v139, %v658
    %v661 = vxor.u32 %v660, 2147483648
    %v662 = vmul.f32 %v661, 1.442695
    %v663 = vpow.pop %v662
    %v664 = vadd.f32 %v663, 1.0
    %v665 = vrcp.pop %v664
    %v666 = vmul.f32 %v664, %v665
    %v667 = vsub.f32 1.0, %v666
    %v668 = vmul.f32 %v665, %v667
    %v669 = vadd.f32 %v665, %v668
    %vm670 = vweird.f32 %v664
    %vm671 = vweird.f32 %v665
    %vm672 = vmor %vm670, %vm671
    %v673 = vsel %vm672, %v665, %v669
    %v674 = vand.u32 2147483647, %v664
    %vm675 = vcmp.eq.f32.partialorder %v674, 8.507059e+37
    %v676 = vand.u32 %v664, 2147483648
    %v677 = vor.u32 1.1754944e-38, %v676
    %v678 = vsel %vm675, %v677, %v673
    %v679 = vmul.f32 1.0, %v678
    %680 = vrot.lane.b32.xlu0 %v658, 64
    %v681 = vpop.permute.xlu0 %680
    %v683 = vmul.f32 %v679, %v681
    %685 = vrot.lane.b32.xlu0 %v683, 64
    %v686 = vpop.permute.xlu0 %685
    %v688 = vadd.f32 %v139, %v686
    %v689 = vtanh.pop %v688
    %v690 = vsub.f32 1.0, %v679
    %692 = vrot.lane.b32.xlu0 %v689, 96
    %v693 = vpop.permute.xlu0 %692
    %v695 = vmul.f32 %v690, %v693
    %v696 = vrot.slane %v630, 2
    %v698 = vmul.f32 %v679, %v696
    %v699 = vadd.f32 %v695, %v698
    %v701 = vrot.slane %v699, 4
    %702 = vrot.lane.b32.xlu0 %v701, 96
    %v703 = vpop.permute.xlu0 %702
    %v704 = vsel %vm80, %v703, 0
    %706 = vmatpush.msra.mxu0 0.0
    %707 = vmatpush.msra.mxu0 0.0
    %708 = vmatpush.msra.mxu0 0.0
    %709 = vmatpush.msra.mxu0 0.0
    %710 = vmatpush.msra.mxu0 0.0
    %711 = vmatpush.msra.mxu0 0.0
    %712 = vmatpush.msra.mxu0 0.0
    %713 = vmatpush.msra.mxu0 0.0
    %714 = vmatpush.msra.mxu0 0.0
    %715 = vmatpush.msra.mxu0 0.0
    %716 = vmatpush.msra.mxu0 0.0
    %717 = vmatpush.msra.mxu0 0.0
    %718 = vmatpush.msra.mxu0 %v565
    %719 = vmatpush.msra.mxu0 %v564
    %720 = vmatpush.msra.mxu0 %v563
    %721 = vmatpush.msra.mxu0 %v562
    %722 = vmatmul.f32.gmra.mxu0 %v704
    %v723 = vpop.f32.mrf.mxu0
    %v724 = vadd.f32 %v568, %v723
    %725 = vdwg.mxu0
    %v727 = vrot.slane %v724, 6
    %v729 = vadd.f32 %v139, %v727
    %v730 = vxor.u32 %v729, 2147483648
    %v731 = vmul.f32 %v730, 1.442695
    %v732 = vpow.pop %v731
    %v733 = vadd.f32 %v732, 1.0
    %v734 = vrcp.pop %v733
    %v735 = vmul.f32 %v733, %v734
    %v736 = vsub.f32 1.0, %v735
    %v737 = vmul.f32 %v734, %v736
    %v738 = vadd.f32 %v734, %v737
    %vm739 = vweird.f32 %v733
    %vm740 = vweird.f32 %v734
    %vm741 = vmor %vm739, %vm740
    %v742 = vsel %vm741, %v734, %v738
    %v743 = vand.u32 2147483647, %v733
    %vm744 = vcmp.eq.f32.partialorder %v743, 8.507059e+37
    %v745 = vand.u32 %v733, 2147483648
    %v746 = vor.u32 1.1754944e-38, %v745
    %v747 = vsel %vm744, %v746, %v742
    %v748 = vmul.f32 1.0, %v747
    %749 = vrot.lane.b32.xlu0 %v727, 64
    %v750 = vpop.permute.xlu0 %749
    %v752 = vmul.f32 %v748, %v750
    %754 = vrot.lane.b32.xlu0 %v752, 64
    %v755 = vpop.permute.xlu0 %754
    %v757 = vadd.f32 %v139, %v755
    %v758 = vtanh.pop %v757
    %v759 = vsub.f32 1.0, %v748
    %761 = vrot.lane.b32.xlu0 %v758, 96
    %v762 = vpop.permute.xlu0 %761
    %v764 = vmul.f32 %v759, %v762
    %v765 = vrot.slane %v699, 2
    %v767 = vmul.f32 %v748, %v765
    %v768 = vadd.f32 %v764, %v767
    %v770 = vrot.slane %v768, 2
    %771 = vrot.lane.b32.xlu0 %v770, 96
    %v772 = vpop.permute.xlu0 %771
    %v773 = vsel %vm80, %v772, 0
    %775 = vmatpush.msra.mxu0 0.0
    %776 = vmatpush.msra.mxu0 0.0
    %777 = vmatpush.msra.mxu0 0.0
    %778 = vmatpush.msra.mxu0 0.0
    %779 = vmatpush.msra.mxu0 0.0
    %780 = vmatpush.msra.mxu0 0.0
    %781 = vmatpush.msra.mxu0 0.0
    %782 = vmatpush.msra.mxu0 0.0
    %783 = vmatpush.msra.mxu0 0.0
    %784 = vmatpush.msra.mxu0 0.0
    %785 = vmatpush.msra.mxu0 0.0
    %786 = vmatpush.msra.mxu0 0.0
    %787 = vmatpush.msra.mxu0 %v565
    %788 = vmatpush.msra.mxu0 %v564
    %789 = vmatpush.msra.mxu0 %v563
    %790 = vmatpush.msra.mxu0 %v562
    %791 = vmatmul.f32.gmra.mxu0 %v773
    %v792 = vpop.f32.mrf.mxu0
    %v793 = vadd.f32 %v568, %v792
    %794 = vdwg.mxu0
    %v795 = vadd.f32 %v139, %v793
    %v796 = vxor.u32 %v795, 2147483648
    %v797 = vmul.f32 %v796, 1.442695
    %v798 = vpow.pop %v797
    %v799 = vadd.f32 %v798, 1.0
    %v800 = vrcp.pop %v799
    %v801 = vmul.f32 %v799, %v800
    %v802 = vsub.f32 1.0, %v801
    %v803 = vmul.f32 %v800, %v802
    %v804 = vadd.f32 %v800, %v803
    %vm805 = vweird.f32 %v799
    %vm806 = vweird.f32 %v800
    %vm807 = vmor %vm805, %vm806
    %v808 = vsel %vm807, %v800, %v804
    %v809 = vand.u32 2147483647, %v799
    %vm810 = vcmp.eq.f32.partialorder %v809, 8.507059e+37
    %v811 = vand.u32 %v799, 2147483648
    %v812 = vor.u32 1.1754944e-38, %v811
    %v813 = vsel %vm810, %v812, %v808
    %v814 = vmul.f32 1.0, %v813
    %816 = vrot.lane.b32.xlu0 %v793, 64
    %v817 = vpop.permute.xlu0 %816
    %v819 = vmul.f32 %v814, %v817
    %821 = vrot.lane.b32.xlu0 %v819, 64
    %v822 = vpop.permute.xlu0 %821
    %v824 = vadd.f32 %v139, %v822
    %v825 = vtanh.pop %v824
    %v826 = vsub.f32 1.0, %v814
    %828 = vrot.lane.b32.xlu0 %v825, 96
    %v829 = vpop.permute.xlu0 %828
    %v831 = vmul.f32 %v826, %v829
    %v833 = vmul.f32 %v814, %v770
    %v834 = vadd.f32 %v831, %v833
    %836 = vrot.lane.b32.xlu0 %v834, 96
    %v837 = vpop.permute.xlu0 %836
    %v838 = vsel %vm80, %v837, 0
    %840 = vmatpush.msra.mxu0 0.0
    %841 = vmatpush.msra.mxu0 0.0
    %842 = vmatpush.msra.mxu0 0.0
    %843 = vmatpush.msra.mxu0 0.0
    %844 = vmatpush.msra.mxu0 0.0
    %845 = vmatpush.msra.mxu0 0.0
    %846 = vmatpush.msra.mxu0 0.0
    %847 = vmatpush.msra.mxu0 0.0
    %848 = vmatpush.msra.mxu0 0.0
    %849 = vmatpush.msra.mxu0 0.0
    %850 = vmatpush.msra.mxu0 0.0
    %851 = vmatpush.msra.mxu0 0.0
    %852 = vmatpush.msra.mxu0 %v565
    %853 = vmatpush.msra.mxu0 %v564
    %854 = vmatpush.msra.mxu0 %v563
    %855 = vmatpush.msra.mxu0 %v562
    %856 = vmatmul.f32.gmra.mxu0 %v838
    %v857 = vpop.f32.mrf.mxu0
    %v858 = vadd.f32 %v568, %v857
    %859 = vdwg.mxu0
    %v861 = vrot.slane %v858, 2
    %v863 = vadd.f32 %v136, %v861
    %v864 = vxor.u32 %v863, 2147483648
    %v865 = vmul.f32 %v864, 1.442695
    %v866 = vpow.pop %v865
    %v867 = vadd.f32 %v866, 1.0
    %v868 = vrcp.pop %v867
    %v869 = vmul.f32 %v867, %v868
    %v870 = vsub.f32 1.0, %v869
    %v871 = vmul.f32 %v868, %v870
    %v872 = vadd.f32 %v868, %v871
    %vm873 = vweird.f32 %v867
    %vm874 = vweird.f32 %v868
    %vm875 = vmor %vm873, %vm874
    %v876 = vsel %vm875, %v868, %v872
    %v877 = vand.u32 2147483647, %v867
    %vm878 = vcmp.eq.f32.partialorder %v877, 8.507059e+37
    %v879 = vand.u32 %v867, 2147483648
    %v880 = vor.u32 1.1754944e-38, %v879
    %v881 = vsel %vm878, %v880, %v876
    %v882 = vmul.f32 1.0, %v881
    %883 = vrot.lane.b32.xlu0 %v861, 64
    %v884 = vpop.permute.xlu0 %883
    %v886 = vmul.f32 %v882, %v884
    %888 = vrot.lane.b32.xlu0 %v886, 64
    %v889 = vpop.permute.xlu0 %888
    %v891 = vadd.f32 %v136, %v889
    %v892 = vtanh.pop %v891
    %v893 = vsub.f32 1.0, %v882
    %895 = vrot.lane.b32.xlu0 %v892, 96
    %v896 = vpop.permute.xlu0 %895
    %v898 = vmul.f32 %v893, %v896
    %v899 = vrot.slane %v834, 2
    %v901 = vmul.f32 %v882, %v899
    %v902 = vadd.f32 %v898, %v901
    %v904 = vrot.slane %v902, 6
    %905 = vrot.lane.b32.xlu0 %v904, 96
    %v906 = vpop.permute.xlu0 %905
    %v907 = vsel %vm80, %v906, 0
    %909 = vmatpush.msra.mxu0 0.0
    %910 = vmatpush.msra.mxu0 0.0
    %911 = vmatpush.msra.mxu0 0.0
    %912 = vmatpush.msra.mxu0 0.0
    %913 = vmatpush.msra.mxu0 0.0
    %914 = vmatpush.msra.mxu0 0.0
    %915 = vmatpush.msra.mxu0 0.0
    %916 = vmatpush.msra.mxu0 0.0
    %917 = vmatpush.msra.mxu0 0.0
    %918 = vmatpush.msra.mxu0 0.0
    %919 = vmatpush.msra.mxu0 0.0
    %920 = vmatpush.msra.mxu0 0.0
    %921 = vmatpush.msra.mxu0 %v565
    %922 = vmatpush.msra.mxu0 %v564
    %923 = vmatpush.msra.mxu0 %v563
    %924 = vmatpush.msra.mxu0 %v562
    %925 = vmatmul.f32.gmra.mxu0 %v907
    %v926 = vpop.f32.mrf.mxu0
    %v927 = vadd.f32 %v568, %v926
    %928 = vdwg.mxu0
    %v930 = vrot.slane %v927, 4
    %v932 = vadd.f32 %v136, %v930
    %v933 = vxor.u32 %v932, 2147483648
    %v934 = vmul.f32 %v933, 1.442695
    %v935 = vpow.pop %v934
    %v936 = vadd.f32 %v935, 1.0
    %v937 = vrcp.pop %v936
    %v938 = vmul.f32 %v936, %v937
    %v939 = vsub.f32 1.0, %v938
    %v940 = vmul.f32 %v937, %v939
    %v941 = vadd.f32 %v937, %v940
    %vm942 = vweird.f32 %v936
    %vm943 = vweird.f32 %v937
    %vm944 = vmor %vm942, %vm943
    %v945 = vsel %vm944, %v937, %v941
    %v946 = vand.u32 2147483647, %v936
    %vm947 = vcmp.eq.f32.partialorder %v946, 8.507059e+37
    %v948 = vand.u32 %v936, 2147483648
    %v949 = vor.u32 1.1754944e-38, %v948
    %v950 = vsel %vm947, %v949, %v945
    %v951 = vmul.f32 1.0, %v950
    %952 = vrot.lane.b32.xlu0 %v930, 64
    %v953 = vpop.permute.xlu0 %952
    %v955 = vmul.f32 %v951, %v953
    %957 = vrot.lane.b32.xlu0 %v955, 64
    %v958 = vpop.permute.xlu0 %957
    %v960 = vadd.f32 %v136, %v958
    %v961 = vtanh.pop %v960
    %v962 = vsub.f32 1.0, %v951
    %964 = vrot.lane.b32.xlu0 %v961, 96
    %v965 = vpop.permute.xlu0 %964
    %v967 = vmul.f32 %v962, %v965
    %v968 = vrot.slane %v902, 2
    %v970 = vmul.f32 %v951, %v968
    %v971 = vadd.f32 %v967, %v970
    %v973 = vrot.slane %v971, 4
    %974 = vrot.lane.b32.xlu0 %v973, 96
    %v975 = vpop.permute.xlu0 %974
    %v976 = vsel %vm80, %v975, 0
    %978 = vmatpush.msra.mxu0 0.0
    %979 = vmatpush.msra.mxu0 0.0
    %980 = vmatpush.msra.mxu0 0.0
    %981 = vmatpush.msra.mxu0 0.0
    %982 = vmatpush.msra.mxu0 0.0
    %983 = vmatpush.msra.mxu0 0.0
    %984 = vmatpush.msra.mxu0 0.0
    %985 = vmatpush.msra.mxu0 0.0
    %986 = vmatpush.msra.mxu0 0.0
    %987 = vmatpush.msra.mxu0 0.0
    %988 = vmatpush.msra.mxu0 0.0
    %989 = vmatpush.msra.mxu0 0.0
    %990 = vmatpush.msra.mxu0 %v565
    %991 = vmatpush.msra.mxu0 %v564
    %992 = vmatpush.msra.mxu0 %v563
    %993 = vmatpush.msra.mxu0 %v562
    %994 = vmatmul.f32.gmra.mxu0 %v976
    %v995 = vpop.f32.mrf.mxu0
    %v996 = vadd.f32 %v568, %v995
    %997 = vdwg.mxu0
    %v999 = vrot.slane %v996, 6
    %v1001 = vadd.f32 %v136, %v999
    %v1002 = vxor.u32 %v1001, 2147483648
    %v1003 = vmul.f32 %v1002, 1.442695
    %v1004 = vpow.pop %v1003
    %v1005 = vadd.f32 %v1004, 1.0
    %v1006 = vrcp.pop %v1005
    %v1007 = vmul.f32 %v1005, %v1006
    %v1008 = vsub.f32 1.0, %v1007
    %v1009 = vmul.f32 %v1006, %v1008
    %v1010 = vadd.f32 %v1006, %v1009
    %vm1011 = vweird.f32 %v1005
    %vm1012 = vweird.f32 %v1006
    %vm1013 = vmor %vm1011, %vm1012
    %v1014 = vsel %vm1013, %v1006, %v1010
    %v1015 = vand.u32 2147483647, %v1005
    %vm1016 = vcmp.eq.f32.partialorder %v1015, 8.507059e+37
    %v1017 = vand.u32 %v1005, 2147483648
    %v1018 = vor.u32 1.1754944e-38, %v1017
    %v1019 = vsel %vm1016, %v1018, %v1014
    %v1020 = vmul.f32 1.0, %v1019
    %1021 = vrot.lane.b32.xlu0 %v999, 64
    %v1022 = vpop.permute.xlu0 %1021
    %v1024 = vmul.f32 %v1020, %v1022
    %1026 = vrot.lane.b32.xlu0 %v1024, 64
    %v1027 = vpop.permute.xlu0 %1026
    %v1029 = vadd.f32 %v136, %v1027
    %v1030 = vtanh.pop %v1029
    %v1031 = vsub.f32 1.0, %v1020
    %1033 = vrot.lane.b32.xlu0 %v1030, 96
    %v1034 = vpop.permute.xlu0 %1033
    %v1036 = vmul.f32 %v1031, %v1034
    %v1037 = vrot.slane %v971, 2
    %v1039 = vmul.f32 %v1020, %v1037
    %v1040 = vadd.f32 %v1036, %v1039
    %v1042 = vrot.slane %v1040, 2
    %1043 = vrot.lane.b32.xlu0 %v1042, 96
    %v1044 = vpop.permute.xlu0 %1043
    %v1045 = vsel %vm80, %v1044, 0
    %1047 = vmatpush.msra.mxu0 0.0
    %1048 = vmatpush.msra.mxu0 0.0
    %1049 = vmatpush.msra.mxu0 0.0
    %1050 = vmatpush.msra.mxu0 0.0
    %1051 = vmatpush.msra.mxu0 0.0
    %1052 = vmatpush.msra.mxu0 0.0
    %1053 = vmatpush.msra.mxu0 0.0
    %1054 = vmatpush.msra.mxu0 0.0
    %1055 = vmatpush.msra.mxu0 0.0
    %1056 = vmatpush.msra.mxu0 0.0
    %1057 = vmatpush.msra.mxu0 0.0
    %1058 = vmatpush.msra.mxu0 0.0
    %1059 = vmatpush.msra.mxu0 %v565
    %1060 = vmatpush.msra.mxu0 %v564
    %1061 = vmatpush.msra.mxu0 %v563
    %1062 = vmatpush.msra.mxu0 %v562
    %1063 = vmatmul.f32.gmra.mxu0 %v1045
    %v1064 = vpop.f32.mrf.mxu0
    %v1065 = vadd.f32 %v568, %v1064
    %1066 = vdwg.mxu0
    %v1067 = vadd.f32 %v136, %v1065
    %v1068 = vxor.u32 %v1067, 2147483648
    %v1069 = vmul.f32 %v1068, 1.442695
    %v1070 = vpow.pop %v1069
    %v1071 = vadd.f32 %v1070, 1.0
    %v1072 = vrcp.pop %v1071
    %v1073 = vmul.f32 %v1071, %v1072
    %v1074 = vsub.f32 1.0, %v1073
    %v1075 = vmul.f32 %v1072, %v1074
    %v1076 = vadd.f32 %v1072, %v1075
    %vm1077 = vweird.f32 %v1071
    %vm1078 = vweird.f32 %v1072
    %vm1079 = vmor %vm1077, %vm1078
    %v1080 = vsel %vm1079, %v1072, %v1076
    %v1081 = vand.u32 2147483647, %v1071
    %vm1082 = vcmp.eq.f32.partialorder %v1081, 8.507059e+37
    %v1083 = vand.u32 %v1071, 2147483648
    %v1084 = vor.u32 1.1754944e-38, %v1083
    %v1085 = vsel %vm1082, %v1084, %v1080
    %v1086 = vmul.f32 1.0, %v1085
    %1088 = vrot.lane.b32.xlu0 %v1065, 64
    %v1089 = vpop.permute.xlu0 %1088
    %v1091 = vmul.f32 %v1086, %v1089
    %1093 = vrot.lane.b32.xlu0 %v1091, 64
    %v1094 = vpop.permute.xlu0 %1093
    %v1096 = vadd.f32 %v136, %v1094
    %v1097 = vtanh.pop %v1096
    %v1098 = vsub.f32 1.0, %v1086
    %1100 = vrot.lane.b32.xlu0 %v1097, 96
    %v1101 = vpop.permute.xlu0 %1100
    %v1103 = vmul.f32 %v1098, %v1101
    %v1105 = vmul.f32 %v1086, %v1042
    %v1106 = vadd.f32 %v1103, %v1105
    %v1107 = vsel %vm551, %v1106, %v1040
    %v1108 = vsel %vm553, %v1107, %v971
    %v1109 = vsel %vm555, %v1108, %v902
    %v1110 = vsel %vm551, %v834, %v768
    %v1111 = vld [vmem:[%s10] sm:$0xff]
    %v1112 = vld [vmem:[%s10 + $0x8] sm:$0xff]
    %v1113 = vld [vmem:[%s10 + $0x10] sm:$0xff]
    %v1114 = vld [vmem:[%s10 + $0x18] sm:$0xff]
    %1117 = vrot.lane.b32.xlu0 %v1109, 96
    %v1118 = vpop.permute.xlu0 %1117
    %1119 = vrot.lane.b32.xlu0 %v1110, 96
    %v1120 = vpop.permute.xlu0 %1119
    %v1121 = vsel %vm80, %v1118, 0
    %v1123 = vsel %vm80, %v1120, 0
    %1125 = vmatpush.msra.mxu0 0.0
    %1126 = vmatpush.msra.mxu0 0.0
    %1127 = vmatpush.msra.mxu0 0.0
    %1128 = vmatpush.msra.mxu0 0.0
    %1129 = vmatpush.msra.mxu0 0.0
    %1130 = vmatpush.msra.mxu0 0.0
    %1131 = vmatpush.msra.mxu0 0.0
    %1132 = vmatpush.msra.mxu0 0.0
    %1133 = vmatpush.msra.mxu0 0.0
    %1134 = vmatpush.msra.mxu0 0.0
    %1135 = vmatpush.msra.mxu0 0.0
    %1136 = vmatpush.msra.mxu0 0.0
    %1137 = vmatpush.msra.mxu0 %v1114
    %1138 = vmatpush.msra.mxu0 %v1113
    %1139 = vmatpush.msra.mxu0 %v1112
    %1140 = vmatpush.msra.mxu0 %v1111
    %1141 = vmatmul.f32.gmra.mxu0 %v1121
    %v1142 = vpop.f32.mrf.mxu0
    %v1143 = vadd.f32 0.0, %v1142
    %1144 = vmatmul.f32.gmra.mxu0 %v1123
    %v1145 = vpop.f32.mrf.mxu0
    %v1146 = vadd.f32 0.0, %v1145
    %1147 = vdwg.mxu0
    %1150 = vrot.lane.b32.xlu0 %v556, 96
    %v1151 = vpop.permute.xlu0 %1150
    %1152 = vrot.lane.b32.xlu0 %v557, 96
    %v1153 = vpop.permute.xlu0 %1152
    %v1154 = vsel %vm80, %v1151, 0
    %v1156 = vsel %vm80, %v1153, 0
    %1158 = vmatpush.msra.mxu0 0.0
    %1159 = vmatpush.msra.mxu0 0.0
    %1160 = vmatpush.msra.mxu0 0.0
    %1161 = vmatpush.msra.mxu0 0.0
    %1162 = vmatpush.msra.mxu0 0.0
    %1163 = vmatpush.msra.mxu0 0.0
    %1164 = vmatpush.msra.mxu0 0.0
    %1165 = vmatpush.msra.mxu0 0.0
    %1166 = vmatpush.msra.mxu0 0.0
    %1167 = vmatpush.msra.mxu0 0.0
    %1168 = vmatpush.msra.mxu0 0.0
    %1169 = vmatpush.msra.mxu0 0.0
    %1170 = vmatpush.msra.mxu0 %v561
    %1171 = vmatpush.msra.mxu0 %v560
    %1172 = vmatpush.msra.mxu0 %v559
    %1173 = vmatpush.msra.mxu0 %v558
    %1174 = vmatmul.f32.gmra.mxu0 %v1154
    %v1175 = vpop.f32.mrf.mxu0
    %v1176 = vadd.f32 %v1143, %v1175
    %1177 = vmatmul.f32.gmra.mxu0 %v1156
    %v1178 = vpop.f32.mrf.mxu0
    %v1179 = vadd.f32 %v1146, %v1178
    %1180 = vdwg.mxu0
    %v1181 = vld [vmem:[%s11] sm:$0x1]
    %v1183 = vperm.slane %v1181, 0
    %v1185 = vadd.f32 %v1176, %v1183
    %v1186 = vadd.f32 %v1179, %v1183
    %v1187 = vld [vmem:[%s12] sm:$0xff]
    %v1188 = vld [vmem:[%s12 + $0x8] sm:$0xff]
    %v1189 = vld [vmem:[%s12 + $0x10] sm:$0xff]
    %v1190 = vld [vmem:[%s12 + $0x18] sm:$0xff]
    %v1191 = vld [vmem:[%s13] sm:$0x1]
    %v1193 = vperm.slane %v1191, 0
    %1195 = vmatpush.msra.mxu0 0.0
    %1196 = vmatpush.msra.mxu0 0.0
    %1197 = vmatpush.msra.mxu0 0.0
    %1198 = vmatpush.msra.mxu0 0.0
    %1199 = vmatpush.msra.mxu0 0.0
    %1200 = vmatpush.msra.mxu0 0.0
    %1201 = vmatpush.msra.mxu0 0.0
    %1202 = vmatpush.msra.mxu0 0.0
    %1203 = vmatpush.msra.mxu0 0.0
    %1204 = vmatpush.msra.mxu0 0.0
    %1205 = vmatpush.msra.mxu0 0.0
    %1206 = vmatpush.msra.mxu0 0.0
    %1207 = vmatpush.msra.mxu0 %v1190
    %1208 = vmatpush.msra.mxu0 %v1189
    %1209 = vmatpush.msra.mxu0 %v1188
    %1210 = vmatpush.msra.mxu0 %v1187
    %1211 = vmatmul.f32.gmra.mxu0 %v150
    %v1212 = vpop.f32.mrf.mxu0
    %v1213 = vadd.f32 %v1193, %v1212
    %1214 = vdwg.mxu0
    %v1215 = vadd.f32 %v1185, %v1213
    %v1216 = vxor.u32 %v1215, 2147483648
    %v1217 = vmul.f32 %v1216, 1.442695
    %v1218 = vpow.pop %v1217
    %v1219 = vadd.f32 %v1218, 1.0
    %v1220 = vrcp.pop %v1219
    %v1221 = vmul.f32 %v1219, %v1220
    %v1222 = vsub.f32 1.0, %v1221
    %v1223 = vmul.f32 %v1220, %v1222
    %v1224 = vadd.f32 %v1220, %v1223
    %vm1225 = vweird.f32 %v1219
    %vm1226 = vweird.f32 %v1220
    %vm1227 = vmor %vm1225, %vm1226
    %v1228 = vsel %vm1227, %v1220, %v1224
    %v1229 = vand.u32 2147483647, %v1219
    %vm1230 = vcmp.eq.f32.partialorder %v1229, 8.507059e+37
    %v1231 = vand.u32 %v1219, 2147483648
    %v1232 = vor.u32 1.1754944e-38, %v1231
    %v1233 = vsel %vm1230, %v1232, %v1228
    %v1234 = vmul.f32 1.0, %v1233
    %1236 = vrot.lane.b32.xlu0 %v1213, 64
    %v1237 = vpop.permute.xlu0 %1236
    %v1239 = vmul.f32 %v1234, %v1237
    %1241 = vrot.lane.b32.xlu0 %v1239, 64
    %v1242 = vpop.permute.xlu0 %1241
    %v1244 = vadd.f32 %v1185, %v1242
    %v1245 = vtanh.pop %v1244
    %v1246 = vsub.f32 1.0, %v1234
    %1248 = vrot.lane.b32.xlu0 %v1245, 96
    %v1249 = vpop.permute.xlu0 %1248
    %v1251 = vmul.f32 %v1246, %v1249
    %v1252 = vmul.f32 %v1234, 0.0
    %v1253 = vadd.f32 %v1251, %v1252
    %1255 = vrot.lane.b32.xlu0 %v1253, 96
    %v1256 = vpop.permute.xlu0 %1255
    %v1257 = vsel %vm80, %v1256, 0
    %1259 = vmatpush.msra.mxu0 0.0
    %1260 = vmatpush.msra.mxu0 0.0
    %1261 = vmatpush.msra.mxu0 0.0
    %1262 = vmatpush.msra.mxu0 0.0
    %1263 = vmatpush.msra.mxu0 0.0
    %1264 = vmatpush.msra.mxu0 0.0
    %1265 = vmatpush.msra.mxu0 0.0
    %1266 = vmatpush.msra.mxu0 0.0
    %1267 = vmatpush.msra.mxu0 0.0
    %1268 = vmatpush.msra.mxu0 0.0
    %1269 = vmatpush.msra.mxu0 0.0
    %1270 = vmatpush.msra.mxu0 0.0
    %1271 = vmatpush.msra.mxu0 %v1190
    %1272 = vmatpush.msra.mxu0 %v1189
    %1273 = vmatpush.msra.mxu0 %v1188
    %1274 = vmatpush.msra.mxu0 %v1187
    %1275 = vmatmul.f32.gmra.mxu0 %v1257
    %v1276 = vpop.f32.mrf.mxu0
    %v1277 = vadd.f32 %v1193, %v1276
    %1278 = vdwg.mxu0
    %v1280 = vrot.slane %v1277, 6
    %v1282 = vadd.f32 %v1185, %v1280
    %v1283 = vxor.u32 %v1282, 2147483648
    %v1284 = vmul.f32 %v1283, 1.442695
    %v1285 = vpow.pop %v1284
    %v1286 = vadd.f32 %v1285, 1.0
    %v1287 = vrcp.pop %v1286
    %v1288 = vmul.f32 %v1286, %v1287
    %v1289 = vsub.f32 1.0, %v1288
    %v1290 = vmul.f32 %v1287, %v1289
    %v1291 = vadd.f32 %v1287, %v1290
    %vm1292 = vweird.f32 %v1286
    %vm1293 = vweird.f32 %v1287
    %vm1294 = vmor %vm1292, %vm1293
    %v1295 = vsel %vm1294, %v1287, %v1291
    %v1296 = vand.u32 2147483647, %v1286
    %vm1297 = vcmp.eq.f32.partialorder %v1296, 8.507059e+37
    %v1298 = vand.u32 %v1286, 2147483648
    %v1299 = vor.u32 1.1754944e-38, %v1298
    %v1300 = vsel %vm1297, %v1299, %v1295
    %v1301 = vmul.f32 1.0, %v1300
    %1302 = vrot.lane.b32.xlu0 %v1280, 64
    %v1303 = vpop.permute.xlu0 %1302
    %v1305 = vmul.f32 %v1301, %v1303
    %1307 = vrot.lane.b32.xlu0 %v1305, 64
    %v1308 = vpop.permute.xlu0 %1307
    %v1310 = vadd.f32 %v1185, %v1308
    %v1311 = vtanh.pop %v1310
    %v1312 = vsub.f32 1.0, %v1301
    %1314 = vrot.lane.b32.xlu0 %v1311, 96
    %v1315 = vpop.permute.xlu0 %1314
    %v1317 = vmul.f32 %v1312, %v1315
    %v1318 = vrot.slane %v1253, 6
    %v1320 = vmul.f32 %v1301, %v1318
    %v1321 = vadd.f32 %v1317, %v1320
    %v1323 = vrot.slane %v1321, 2
    %1324 = vrot.lane.b32.xlu0 %v1323, 96
    %v1325 = vpop.permute.xlu0 %1324
    %v1326 = vsel %vm80, %v1325, 0
    %1328 = vmatpush.msra.mxu0 0.0
    %1329 = vmatpush.msra.mxu0 0.0
    %1330 = vmatpush.msra.mxu0 0.0
    %1331 = vmatpush.msra.mxu0 0.0
    %1332 = vmatpush.msra.mxu0 0.0
    %1333 = vmatpush.msra.mxu0 0.0
    %1334 = vmatpush.msra.mxu0 0.0
    %1335 = vmatpush.msra.mxu0 0.0
    %1336 = vmatpush.msra.mxu0 0.0
    %1337 = vmatpush.msra.mxu0 0.0
    %1338 = vmatpush.msra.mxu0 0.0
    %1339 = vmatpush.msra.mxu0 0.0
    %1340 = vmatpush.msra.mxu0 %v1190
    %1341 = vmatpush.msra.mxu0 %v1189
    %1342 = vmatpush.msra.mxu0 %v1188
    %1343 = vmatpush.msra.mxu0 %v1187
    %1344 = vmatmul.f32.gmra.mxu0 %v1326
    %v1345 = vpop.f32.mrf.mxu0
    %v1346 = vadd.f32 %v1193, %v1345
    %1347 = vdwg.mxu0
    %v1349 = vrot.slane %v1346, 4
    %v1351 = vadd.f32 %v1185, %v1349
    %v1352 = vxor.u32 %v1351, 2147483648
    %v1353 = vmul.f32 %v1352, 1.442695
    %v1354 = vpow.pop %v1353
    %v1355 = vadd.f32 %v1354, 1.0
    %v1356 = vrcp.pop %v1355
    %v1357 = vmul.f32 %v1355, %v1356
    %v1358 = vsub.f32 1.0, %v1357
    %v1359 = vmul.f32 %v1356, %v1358
    %v1360 = vadd.f32 %v1356, %v1359
    %vm1361 = vweird.f32 %v1355
    %vm1362 = vweird.f32 %v1356
    %vm1363 = vmor %vm1361, %vm1362
    %v1364 = vsel %vm1363, %v1356, %v1360
    %v1365 = vand.u32 2147483647, %v1355
    %vm1366 = vcmp.eq.f32.partialorder %v1365, 8.507059e+37
    %v1367 = vand.u32 %v1355, 2147483648
    %v1368 = vor.u32 1.1754944e-38, %v1367
    %v1369 = vsel %vm1366, %v1368, %v1364
    %v1370 = vmul.f32 1.0, %v1369
    %1371 = vrot.lane.b32.xlu0 %v1349, 64
    %v1372 = vpop.permute.xlu0 %1371
    %v1374 = vmul.f32 %v1370, %v1372
    %1376 = vrot.lane.b32.xlu0 %v1374, 64
    %v1377 = vpop.permute.xlu0 %1376
    %v1379 = vadd.f32 %v1185, %v1377
    %v1380 = vtanh.pop %v1379
    %v1381 = vsub.f32 1.0, %v1370
    %1383 = vrot.lane.b32.xlu0 %v1380, 96
    %v1384 = vpop.permute.xlu0 %1383
    %v1386 = vmul.f32 %v1381, %v1384
    %v1387 = vrot.slane %v1321, 6
    %v1389 = vmul.f32 %v1370, %v1387
    %v1390 = vadd.f32 %v1386, %v1389
    %v1392 = vrot.slane %v1390, 4
    %1393 = vrot.lane.b32.xlu0 %v1392, 96
    %v1394 = vpop.permute.xlu0 %1393
    %v1395 = vsel %vm80, %v1394, 0
    %1397 = vmatpush.msra.mxu0 0.0
    %1398 = vmatpush.msra.mxu0 0.0
    %1399 = vmatpush.msra.mxu0 0.0
    %1400 = vmatpush.msra.mxu0 0.0
    %1401 = vmatpush.msra.mxu0 0.0
    %1402 = vmatpush.msra.mxu0 0.0
    %1403 = vmatpush.msra.mxu0 0.0
    %1404 = vmatpush.msra.mxu0 0.0
    %1405 = vmatpush.msra.mxu0 0.0
    %1406 = vmatpush.msra.mxu0 0.0
    %1407 = vmatpush.msra.mxu0 0.0
    %1408 = vmatpush.msra.mxu0 0.0
    %1409 = vmatpush.msra.mxu0 %v1190
    %1410 = vmatpush.msra.mxu0 %v1189
    %1411 = vmatpush.msra.mxu0 %v1188
    %1412 = vmatpush.msra.mxu0 %v1187
    %1413 = vmatmul.f32.gmra.mxu0 %v1395
    %v1414 = vpop.f32.mrf.mxu0
    %v1415 = vadd.f32 %v1193, %v1414
    %1416 = vdwg.mxu0
    %v1418 = vrot.slane %v1415, 2
    %v1420 = vadd.f32 %v1185, %v1418
    %v1421 = vxor.u32 %v1420, 2147483648
    %v1422 = vmul.f32 %v1421, 1.442695
    %v1423 = vpow.pop %v1422
    %v1424 = vadd.f32 %v1423, 1.0
    %v1425 = vrcp.pop %v1424
    %v1426 = vmul.f32 %v1424, %v1425
    %v1427 = vsub.f32 1.0, %v1426
    %v1428 = vmul.f32 %v1425, %v1427
    %v1429 = vadd.f32 %v1425, %v1428
    %vm1430 = vweird.f32 %v1424
    %vm1431 = vweird.f32 %v1425
    %vm1432 = vmor %vm1430, %vm1431
    %v1433 = vsel %vm1432, %v1425, %v1429
    %v1434 = vand.u32 2147483647, %v1424
    %vm1435 = vcmp.eq.f32.partialorder %v1434, 8.507059e+37
    %v1436 = vand.u32 %v1424, 2147483648
    %v1437 = vor.u32 1.1754944e-38, %v1436
    %v1438 = vsel %vm1435, %v1437, %v1433
    %v1439 = vmul.f32 1.0, %v1438
    %1440 = vrot.lane.b32.xlu0 %v1418, 64
    %v1441 = vpop.permute.xlu0 %1440
    %v1443 = vmul.f32 %v1439, %v1441
    %1445 = vrot.lane.b32.xlu0 %v1443, 64
    %v1446 = vpop.permute.xlu0 %1445
    %v1448 = vadd.f32 %v1185, %v1446
    %v1449 = vtanh.pop %v1448
    %v1450 = vsub.f32 1.0, %v1439
    %1452 = vrot.lane.b32.xlu0 %v1449, 96
    %v1453 = vpop.permute.xlu0 %1452
    %v1455 = vmul.f32 %v1450, %v1453
    %v1456 = vrot.slane %v1390, 6
    %v1458 = vmul.f32 %v1439, %v1456
    %v1459 = vadd.f32 %v1455, %v1458
    %v1461 = vrot.slane %v1459, 6
    %1462 = vrot.lane.b32.xlu0 %v1461, 96
    %v1463 = vpop.permute.xlu0 %1462
    %v1464 = vsel %vm80, %v1463, 0
    %1466 = vmatpush.msra.mxu0 0.0
    %1467 = vmatpush.msra.mxu0 0.0
    %1468 = vmatpush.msra.mxu0 0.0
    %1469 = vmatpush.msra.mxu0 0.0
    %1470 = vmatpush.msra.mxu0 0.0
    %1471 = vmatpush.msra.mxu0 0.0
    %1472 = vmatpush.msra.mxu0 0.0
    %1473 = vmatpush.msra.mxu0 0.0
    %1474 = vmatpush.msra.mxu0 0.0
    %1475 = vmatpush.msra.mxu0 0.0
    %1476 = vmatpush.msra.mxu0 0.0
    %1477 = vmatpush.msra.mxu0 0.0
    %1478 = vmatpush.msra.mxu0 %v1190
    %1479 = vmatpush.msra.mxu0 %v1189
    %1480 = vmatpush.msra.mxu0 %v1188
    %1481 = vmatpush.msra.mxu0 %v1187
    %1482 = vmatmul.f32.gmra.mxu0 %v1464
    %v1483 = vpop.f32.mrf.mxu0
    %v1484 = vadd.f32 %v1193, %v1483
    %1485 = vdwg.mxu0
    %v1486 = vadd.f32 %v1186, %v1484
    %v1487 = vxor.u32 %v1486, 2147483648
    %v1488 = vmul.f32 %v1487, 1.442695
    %v1489 = vpow.pop %v1488
    %v1490 = vadd.f32 %v1489, 1.0
    %v1491 = vrcp.pop %v1490
    %v1492 = vmul.f32 %v1490, %v1491
    %v1493 = vsub.f32 1.0, %v1492
    %v1494 = vmul.f32 %v1491, %v1493
    %v1495 = vadd.f32 %v1491, %v1494
    %vm1496 = vweird.f32 %v1490
    %vm1497 = vweird.f32 %v1491
    %vm1498 = vmor %vm1496, %vm1497
    %v1499 = vsel %vm1498, %v1491, %v1495
    %v1500 = vand.u32 2147483647, %v1490
    %vm1501 = vcmp.eq.f32.partialorder %v1500, 8.507059e+37
    %v1502 = vand.u32 %v1490, 2147483648
    %v1503 = vor.u32 1.1754944e-38, %v1502
    %v1504 = vsel %vm1501, %v1503, %v1499
    %v1505 = vmul.f32 1.0, %v1504
    %1507 = vrot.lane.b32.xlu0 %v1484, 64
    %v1508 = vpop.permute.xlu0 %1507
    %v1510 = vmul.f32 %v1505, %v1508
    %1512 = vrot.lane.b32.xlu0 %v1510, 64
    %v1513 = vpop.permute.xlu0 %1512
    %v1515 = vadd.f32 %v1186, %v1513
    %v1516 = vtanh.pop %v1515
    %v1517 = vsub.f32 1.0, %v1505
    %1519 = vrot.lane.b32.xlu0 %v1516, 96
    %v1520 = vpop.permute.xlu0 %1519
    %v1522 = vmul.f32 %v1517, %v1520
    %v1524 = vmul.f32 %v1505, %v1461
    %v1525 = vadd.f32 %v1522, %v1524
    %1527 = vrot.lane.b32.xlu0 %v1525, 96
    %v1528 = vpop.permute.xlu0 %1527
    %v1529 = vsel %vm80, %v1528, 0
    %1531 = vmatpush.msra.mxu0 0.0
    %1532 = vmatpush.msra.mxu0 0.0
    %1533 = vmatpush.msra.mxu0 0.0
    %1534 = vmatpush.msra.mxu0 0.0
    %1535 = vmatpush.msra.mxu0 0.0
    %1536 = vmatpush.msra.mxu0 0.0
    %1537 = vmatpush.msra.mxu0 0.0
    %1538 = vmatpush.msra.mxu0 0.0
    %1539 = vmatpush.msra.mxu0 0.0
    %1540 = vmatpush.msra.mxu0 0.0
    %1541 = vmatpush.msra.mxu0 0.0
    %1542 = vmatpush.msra.mxu0 0.0
    %1543 = vmatpush.msra.mxu0 %v1190
    %1544 = vmatpush.msra.mxu0 %v1189
    %1545 = vmatpush.msra.mxu0 %v1188
    %1546 = vmatpush.msra.mxu0 %v1187
    %1547 = vmatmul.f32.gmra.mxu0 %v1529
    %v1548 = vpop.f32.mrf.mxu0
    %v1549 = vadd.f32 %v1193, %v1548
    %1550 = vdwg.mxu0
    %v1552 = vrot.slane %v1549, 6
    %v1554 = vadd.f32 %v1186, %v1552
    %v1555 = vxor.u32 %v1554, 2147483648
    %v1556 = vmul.f32 %v1555, 1.442695
    %v1557 = vpow.pop %v1556
    %v1558 = vadd.f32 %v1557, 1.0
    %v1559 = vrcp.pop %v1558
    %v1560 = vmul.f32 %v1558, %v1559
    %v1561 = vsub.f32 1.0, %v1560
    %v1562 = vmul.f32 %v1559, %v1561
    %v1563 = vadd.f32 %v1559, %v1562
    %vm1564 = vweird.f32 %v1558
    %vm1565 = vweird.f32 %v1559
    %vm1566 = vmor %vm1564, %vm1565
    %v1567 = vsel %vm1566, %v1559, %v1563
    %v1568 = vand.u32 2147483647, %v1558
    %vm1569 = vcmp.eq.f32.partialorder %v1568, 8.507059e+37
    %v1570 = vand.u32 %v1558, 2147483648
    %v1571 = vor.u32 1.1754944e-38, %v1570
    %v1572 = vsel %vm1569, %v1571, %v1567
    %v1573 = vmul.f32 1.0, %v1572
    %1574 = vrot.lane.b32.xlu0 %v1552, 64
    %v1575 = vpop.permute.xlu0 %1574
    %v1577 = vmul.f32 %v1573, %v1575
    %1579 = vrot.lane.b32.xlu0 %v1577, 64
    %v1580 = vpop.permute.xlu0 %1579
    %v1582 = vadd.f32 %v1186, %v1580
    %v1583 = vtanh.pop %v1582
    %v1584 = vsub.f32 1.0, %v1573
    %1586 = vrot.lane.b32.xlu0 %v1583, 96
    %v1587 = vpop.permute.xlu0 %1586
    %v1589 = vmul.f32 %v1584, %v1587
    %v1590 = vrot.slane %v1525, 6
    %v1592 = vmul.f32 %v1573, %v1590
    %v1593 = vadd.f32 %v1589, %v1592
    %v1594 = vsel %vm551, %v1253, %v1321
    %v1595 = vsel %vm553, %v1594, %v1390
    %v1596 = vsel %vm555, %v1595, %v1459
    %v1597 = vsel %vm551, %v1525, %v1593
    %v1598 = vld [vmem:[#allocation2] sm:$0xff]
    %v1599 = vld [vmem:[#allocation2 + $0x8] sm:$0xff]
    %v1600 = vld [vmem:[#allocation2 + $0x10] sm:$0xff]
    %v1601 = vld [vmem:[#allocation2 + $0x18] sm:$0xff]
    %v1602 = vld [vmem:[%s15] sm:$0x1]
    %v1604 = vperm.slane %v1602, 0
    %1608 = vrot.lane.b32.xlu0 %v1596, 96
    %v1609 = vpop.permute.xlu0 %1608
    %1610 = vrot.lane.b32.xlu0 %v1597, 96
    %v1611 = vpop.permute.xlu0 %1610
    %v1612 = vsel %vm80, %v1609, 0
    %v1614 = vsel %vm80, %v1611, 0
    %1616 = vmatpush.msra.mxu0 0.0
    %1617 = vmatpush.msra.mxu0 0.0
    %1618 = vmatpush.msra.mxu0 0.0
    %1619 = vmatpush.msra.mxu0 0.0
    %1620 = vmatpush.msra.mxu0 0.0
    %1621 = vmatpush.msra.mxu0 0.0
    %1622 = vmatpush.msra.mxu0 0.0
    %1623 = vmatpush.msra.mxu0 0.0
    %1624 = vmatpush.msra.mxu0 0.0
    %1625 = vmatpush.msra.mxu0 0.0
    %1626 = vmatpush.msra.mxu0 0.0
    %1627 = vmatpush.msra.mxu0 0.0
    %1628 = vmatpush.msra.mxu0 %v1601
    %1629 = vmatpush.msra.mxu0 %v1600
    %1630 = vmatpush.msra.mxu0 %v1599
    %1631 = vmatpush.msra.mxu0 %v1598
    %1632 = vmatmul.f32.gmra.mxu0 %v1612
    %v1633 = vpop.f32.mrf.mxu0
    %v1634 = vadd.f32 %v1604, %v1633
    %1635 = vmatmul.f32.gmra.mxu0 %v1614
    %v1636 = vpop.f32.mrf.mxu0
    %v1637 = vadd.f32 %v1604, %v1636
    %1638 = vdwg.mxu0
    %1639 = vmax.xlane.f32.xlu0 %v1634
    %v1640 = vpop.xlane.xlu0 %1639
    %v1641 = vsel %vm553, %v1637, -inf
    %1642 = vmax.xlane.f32.xlu0 %v1641
    %v1643 = vpop.xlane.xlu0 %1642
    %v1644 = vsub.f32 %v1634, %v1640
    %v1645 = vsub.f32 %v1637, %v1643
    %v1646 = vmul.f32 %v1644, 1.442695
    %v1647 = vpow.pop %v1646
    %v1648 = vmul.f32 %v1645, 1.442695
    %v1649 = vpow.pop %v1648
    %1650 = vadd.xlane.f32.xlu0 %v1647
    %v1651 = vpop.xlane.xlu0 %1650
    %v1652 = vsel %vm553, %v1649, 0.0
    %1653 = vadd.xlane.f32.xlu0 %v1652
    %v1654 = vpop.xlane.xlu0 %1653
    %v1655 = vlog2.pop %v1651
    %v1656 = vmul.f32 %v1655, 0.6931472
    %v1657 = vlog2.pop %v1654
    %v1658 = vmul.f32 %v1657, 0.6931472
    %v1659 = vadd.f32 %v1656, %v1640
    %v1660 = vadd.f32 %v1658, %v1643
    %v1661 = vsub.f32 %v1634, %v1659
    %v1662 = vsub.f32 %v1637, %v1660
    %1663 = vst [vmem:[#allocation5] sm:$0xff] %v1661
    %1664 = vst [vmem:[#allocation5 + $0x8] sm:$0xf] %v1662
    // Predicated region
    $region70: #{rnn_lm_forward.1} parent=1 // pred_check
      _
    $region71: #{rnn_lm_forward.1} parent=1 // pred_check_branch
      %1666 = sbr.rel (0) target = $region73
    $region72: #{rnn_lm_forward.1} parent=1 // pred_region
      %1668 = vsyncadd [#allocation4], 0
      %s1669 = sshll.u32 [#allocation5], 4
      %s1670 = int_to_ptr.vmem [resolvable:$true] %s1669
      %s1671 = sshll.u32 %s16, 4
      %s1672 = int_to_ptr.hbm [resolvable:$true] %s1671
      %1677 = dma.vmem_to_hbm [thread:$0]  %s1670, 256, %s1672, [#allocation4], 128, 128, 8
    $region73: #{rnn_lm_forward.1} parent=1 // pred_fallthru
      _
    // Predicated region
    $region74: #{rnn_lm_forward.1} parent=1 // pred_check
      _
    $region75: #{rnn_lm_forward.1} parent=1 // pred_check_branch
      %1679 = sbr.rel (0) target = $region77
    $region76: #{rnn_lm_forward.1} parent=1 // pred_region
      %1681 = dma.done [#allocation4], 256
    $region77: #{rnn_lm_forward.1} parent=1 // pred_fallthru
      _
    %1682 = vsyncpa [#allocation3], 1
    %1683 = vsyncpa [#allocation4], 1

</llo_original>
